<compile_context>
chip_gen: v6e
topology: v6e:2x2x1
jax: 0.10.0
libtpu: 0.0.40
codegen_flags: <defaults>
</compile_context>

<pallas_src>
import jax
import jax.numpy as jnp
from jax.experimental import pallas as pl
from jax.experimental.pallas import tpu as pltpu


def _elu(y):
    # ELU(alpha=1), matches torch.nn.ELU; clamp the exp argument so the
    # unselected lane never overflows to inf.
    # TODO(synk): jnp.expm1 would be marginally more accurate near 0.
    return jnp.where(y > 0, y, jnp.exp(jnp.minimum(y, 0.0)) - 1.0)


def _encoder_rvq_kernel(x_ref, w1_ref, b1_ref, w2_ref, b2_ref, w3_ref, b3_ref,
                        cb_ref, cbsq_ref, codes_ref):
    """Fused encoder (3 convs) + residual-VQ for one (batch, time-tile) step.

    x_ref    : (1, 1, 4, Tl)   haloed phase-split waveform, x[p, t] = wav[4t+p]
    w1_ref   : (2*C1, 8)  bf16 fused even/odd-phase conv1 weights
    w2_ref   : (C2, 4*C1) bf16 tap-fused conv2 weights
    w3_ref   : (D, 3*C2)  bf16 tap-fused conv3 weights
    b*_ref   : (C, 1)     f32 biases (broadcast over lanes/time)
    cb_ref   : (n_q, K, D) f32 RVQ codebooks
    cbsq_ref : (n_q, K, 1) f32 per-codeword squared norms
    codes_ref: (1, n_q, 128) int32 codes, frame axis on lanes (dense stores)
    """
    tp = x_ref.shape[3]          # local phase frames (tile + halo)
    t1 = tp - 1                  # h1 even/odd frames needed
    t2 = tp - 2                  # frames after conv2
    t3 = tp - 4                  # frames after conv3 (= 128 output frames)
    n_q = cb_ref.shape[0]

    x = x_ref[0, 0].astype(jnp.bfloat16)                       # (4, Tl)

    # ---- Conv1 (C_in=1, kw=4, s=2): even+odd phases fused in ONE matmul ----
    # rows 0:4 = phase frame t, rows 4:8 = phase frame t+1
    x8 = jnp.concatenate([x[:, 0:t1], x[:, 1:t1 + 1]], axis=0)  # (8, T1)
    h1 = _elu(jnp.dot(w1_ref[...], x8, preferred_element_type=jnp.float32)
              + b1_ref[...])                                    # (2*C1, T1)
    # rows 0:C1 = h1[2t] (even), rows C1:2*C1 = h1[2t+1] (odd)

    # ---- Conv2 (kw=4, s=2): 4 taps fused into one (C2, 4*C1) contraction ----
    h1b = h1.astype(jnp.bfloat16)
    x2 = jnp.concatenate([h1b[:, 0:t2], h1b[:, 1:t2 + 1]], axis=0)  # (4*C1, T2)
    h2 = _elu(jnp.dot(w2_ref[...], x2, preferred_element_type=jnp.float32)
              + b2_ref[...])                                    # (C2, T2)

    # ---- Conv3 (kw=3, s=1): 3 taps fused into one (D, 3*C2) contraction ----
    h2b = h2.astype(jnp.bfloat16)
    x3 = jnp.concatenate(
        [h2b[:, 0:t3], h2b[:, 1:t3 + 1], h2b[:, 2:t3 + 2]], axis=0)  # (3*C2, T3)
    z = (jnp.dot(w3_ref[...], x3, preferred_element_type=jnp.float32)
         + b3_ref[...])                                         # (D, T3) f32

    # ---- Residual VQ: all n_q stages fused, residual stays f32 in-core ----
    r = z
    for qi in range(n_q):                                       # static, unrolled
        cb = cb_ref[qi]                                         # (K, D) f32
        # dist(k, t) = ||cb_k||^2 - 2 <cb_k, r_t>   (||r||^2 constant over k)
        scores = jnp.dot(cb, r, preferred_element_type=jnp.float32)   # (K, T3)
        dist = cbsq_ref[qi] - 2.0 * scores
        min_d = jnp.min(dist, axis=0, keepdims=True)            # (1, T3)
        iota_k = jax.lax.broadcasted_iota(jnp.int32, dist.shape, 0)
        # argmin with first-index tie-breaking (matches torch/np argmin)
        # TODO(synk): single-pass packed-key min once K grows to real size.
        codes = jnp.min(
            jnp.where(dist == min_d, iota_k, jnp.int32(2**31 - 1)), axis=0)
        codes_ref[0, qi, :] = codes                             # per-stage store
        if qi + 1 < n_q:                                        # residual update
            onehot = (iota_k == codes[None, :]).astype(jnp.float32)   # (K, T3)
            quant = jax.lax.dot_general(
                cb, onehot, (((0,), (0,)), ((), ())),
                preferred_element_type=jnp.float32)             # (D, T3)
            r = r - quant


def audio_tokenizer_encode(wav, params):
    """Forward pass: wav (B, 1, T) float32 -> codes (B, n_q, T_frames) int32."""
    # TODO(synk): real EnCodec weights come from an audiocraft checkpoint; this
    # uses a structurally equivalent synthetic encoder + RVQ.
    b, c_in, t = wav.shape
    assert c_in == 1 and t % 4 == 0, (c_in, t)
    tp = t // 4
    # valid-conv frame counts: (T,k4,s2) -> (k4,s2) -> (k3,s1)
    t1 = (t - 4) // 2 + 1
    t2 = (t1 - 4) // 2 + 1
    t3 = t2 - 2

    c1 = params["w1"].shape[0]
    c2 = params["w2"].shape[0]
    d = params["w3"].shape[0]
    n_q, k, _ = params["codebooks"].shape

    tf = 128                                  # conv3 output frames per tile
    n_tiles = pl.cdiv(t3, tf)
    tp_loc = tf + 4                           # phase frames per tile incl. halo
    tp_need = tf * (n_tiles - 1) + tp_loc

    # Phase-split waveform, time on lanes: xph[b, p, t] = wav[b, 0, 4t + p].
    xph = wav.reshape(b, tp, 4).transpose(0, 2, 1)              # (B, 4, Tp)
    if tp_need > tp:
        xph = jnp.pad(xph, ((0, 0), (0, 0), (0, tp_need - tp)))
    # Materialize per-tile halo windows (~3% duplication) so every grid step
    # gets a clean non-overlapping BlockSpec block.
    # TODO(synk): at very long audio use a strided gather instead of stack.
    xtiles = jnp.stack(
        [xph[:, :, tf * j: tf * j + tp_loc] for j in range(n_tiles)], axis=1)

    # Conv1 fused even/odd-phase weight (2*C1, 8):
    #   even rows: taps on cols 0..3;  odd rows: taps on cols 2..5.
    w1t = params["w1"][:, 0, :]                                  # (C1, 4)
    zc = jnp.zeros((c1, 2), jnp.float32)
    w1comb = jnp.concatenate(
        [jnp.concatenate([w1t, zc, zc], axis=1),
         jnp.concatenate([zc, w1t, zc], axis=1)], axis=0).astype(jnp.bfloat16)
    b1comb = jnp.tile(params["b1"], 2)[:, None]                  # (2*C1, 1)

    # Tap-fused conv2/conv3 weights: columns blocked by (tap, in-channel).
    w2f = params["w2"].transpose(0, 2, 1).reshape(c2, 4 * c1).astype(jnp.bfloat16)
    w3f = params["w3"].transpose(0, 2, 1).reshape(d, 3 * c2).astype(jnp.bfloat16)
    b2k = params["b2"][:, None]
    b3k = params["b3"][:, None]
    cb = params["codebooks"]
    cbsq = jnp.sum(cb * cb, axis=-1, keepdims=True)              # (n_q, K, 1)

    codes = pl.pallas_call(
        _encoder_rvq_kernel,
        out_shape=jax.ShapeDtypeStruct((b, n_q, n_tiles * tf), jnp.int32),
        grid=(b, n_tiles),
        in_specs=[
            pl.BlockSpec((1, 1, 4, tp_loc), lambda i, j: (i, j, 0, 0)),   # wav tile
            pl.BlockSpec((2 * c1, 8), lambda i, j: (0, 0)),               # w1
            pl.BlockSpec((2 * c1, 1), lambda i, j: (0, 0)),               # b1
            pl.BlockSpec((c2, 4 * c1), lambda i, j: (0, 0)),              # w2
            pl.BlockSpec((c2, 1), lambda i, j: (0, 0)),                   # b2
            pl.BlockSpec((d, 3 * c2), lambda i, j: (0, 0)),               # w3
            pl.BlockSpec((d, 1), lambda i, j: (0, 0)),                    # b3
            pl.BlockSpec((n_q, k, d), lambda i, j: (0, 0, 0)),            # codebooks
            pl.BlockSpec((n_q, k, 1), lambda i, j: (0, 0, 0)),            # ||cb||^2
        ],
        out_specs=pl.BlockSpec((1, n_q, tf), lambda i, j: (i, 0, j)),
        compiler_params=pltpu.CompilerParams(
            dimension_semantics=("parallel", "parallel")),
    )(xtiles, w1comb, b1comb, w2f, b2k, w3f, b3k, cb, cbsq)

    # Drop the zero-padded tail frames of the last tile.
    return codes[:, :, :t3]


# ---------------------------------------------------------------------------
if __name__ == "__main__":
    key = jax.random.PRNGKey(0)
    B, T = 2, 1024            # small synthetic waveform
    C1, C2, D = 16, 32, 32    # encoder channels / latent dim
    N_Q, K = 4, 64            # RVQ: num quantizers, codebook size

    ks = jax.random.split(key, 8)
    params = {
        "w1": 0.1 * jax.random.normal(ks[0], (C1, 1, 4), jnp.float32),
        "b1": 0.1 * jax.random.normal(ks[1], (C1,), jnp.float32),
        "w2": 0.1 * jax.random.normal(ks[2], (C2, C1, 4), jnp.float32),
        "b2": 0.1 * jax.random.normal(ks[3], (C2,), jnp.float32),
        "w3": 0.1 * jax.random.normal(ks[4], (D, C2, 3), jnp.float32),
        "b3": 0.1 * jax.random.normal(ks[5], (D,), jnp.float32),
        "codebooks": jax.random.normal(ks[6], (N_Q, K, D), jnp.float32),
    }
    wav = jax.random.normal(ks[7], (B, 1, T), jnp.float32)

    codes = jax.jit(audio_tokenizer_encode)(wav, params)
    codes = jax.block_until_ready(codes)

    # T frames: 1024 -(k4,s2)-> 511 -(k4,s2)-> 254 -(k3,s1)-> 252
    assert codes.shape == (B, N_Q, 252), codes.shape
    assert codes.dtype == jnp.int32
    assert bool(jnp.all((codes >= 0) & (codes < K)))
    print("KERNEL_OK")
</pallas_src>

<mosaic_0001>
module attributes {stable_mosaic.version = 11 : i64} {
  func.func @_encoder_rvq_kernel(%arg0: i32, %arg1: i32, %arg2: memref<1x1x4x132xf32, #tpu.memory_space<vmem>>, %arg3: memref<32x8xbf16, #tpu.memory_space<vmem>>, %arg4: memref<32x1xf32, #tpu.memory_space<vmem>>, %arg5: memref<32x64xbf16, #tpu.memory_space<vmem>>, %arg6: memref<32x1xf32, #tpu.memory_space<vmem>>, %arg7: memref<32x96xbf16, #tpu.memory_space<vmem>>, %arg8: memref<32x1xf32, #tpu.memory_space<vmem>>, %arg9: memref<4x64x32xf32, #tpu.memory_space<vmem>>, %arg10: memref<4x64x1xf32, #tpu.memory_space<vmem>>, %arg11: memref<1x4x128xi32, #tpu.memory_space<vmem>>) attributes {dimension_semantics = [#tpu.dimension_semantics<parallel>, #tpu.dimension_semantics<parallel>], iteration_bounds = array<i64: 2, 2>, scalar_prefetch = 0 : i64, scratch_operands = 0 : i64, tpu.core_type = #tpu.core_type<tc>, window_params = [{transform_indices = @transform_0, window_bounds = array<i64: 1, 1, 4, 132>}, {pipeline_mode = #tpu.pipeline_mode<synchronous>, transform_indices = @transform_1, window_bounds = array<i64: 32, 8>}, {pipeline_mode = #tpu.pipeline_mode<synchronous>, transform_indices = @transform_2, window_bounds = array<i64: 32, 1>}, {pipeline_mode = #tpu.pipeline_mode<synchronous>, transform_indices = @transform_3, window_bounds = array<i64: 32, 64>}, {pipeline_mode = #tpu.pipeline_mode<synchronous>, transform_indices = @transform_4, window_bounds = array<i64: 32, 1>}, {pipeline_mode = #tpu.pipeline_mode<synchronous>, transform_indices = @transform_5, window_bounds = array<i64: 32, 96>}, {pipeline_mode = #tpu.pipeline_mode<synchronous>, transform_indices = @transform_6, window_bounds = array<i64: 32, 1>}, {pipeline_mode = #tpu.pipeline_mode<synchronous>, transform_indices = @transform_7, window_bounds = array<i64: 4, 64, 32>}, {pipeline_mode = #tpu.pipeline_mode<synchronous>, transform_indices = @transform_8, window_bounds = array<i64: 4, 64, 1>}, {transform_indices = @transform_9, window_bounds = array<i64: 1, 4, 128>}]} {
    %c0 = arith.constant 0 : index
    %c0_0 = arith.constant 0 : index
    %c0_1 = arith.constant 0 : index
    %c0_2 = arith.constant 0 : index
    %0 = vector.load %arg2[%c0, %c0_0, %c0_1, %c0_2] : memref<1x1x4x132xf32, #tpu.memory_space<vmem>>, vector<1x1x4x132xf32>
    %1 = vector.shape_cast %0 : vector<1x1x4x132xf32> to vector<4x132xf32>
    %2 = arith.truncf %1 : vector<4x132xf32> to vector<4x132xbf16>
    %3 = vector.extract_strided_slice %2 {offsets = [0, 0], sizes = [4, 131], strides = [1, 1]} : vector<4x132xbf16> to vector<4x131xbf16>
    %4 = vector.extract_strided_slice %2 {offsets = [0, 1], sizes = [4, 131], strides = [1, 1]} : vector<4x132xbf16> to vector<4x131xbf16>
    %5 = tpu.concatenate %3, %4 in 0 : vector<4x131xbf16>, vector<4x131xbf16> -> vector<8x131xbf16>
    %c0_3 = arith.constant 0 : index
    %c0_4 = arith.constant 0 : index
    %6 = vector.load %arg3[%c0_3, %c0_4] : memref<32x8xbf16, #tpu.memory_space<vmem>>, vector<32x8xbf16>
    %cst = arith.constant dense<0.000000e+00> : vector<32x131xf32>
    %7 = tpu.matmul %6, %5, %cst {dimension_numbers = #tpu.dot_dimension_numbers<[1], [0], [0], [1], [0, 0, 1, 1], [], []>} : vector<32x8xbf16>, vector<8x131xbf16>, vector<32x131xf32> -> vector<32x131xf32>
    %c0_5 = arith.constant 0 : index
    %c0_6 = arith.constant 0 : index
    %8 = vector.load %arg4[%c0_5, %c0_6] : memref<32x1xf32, #tpu.memory_space<vmem>>, vector<32x1xf32>
    %9 = vector.broadcast %8 : vector<32x1xf32> to vector<32x131xf32>
    %10 = arith.addf %7, %9 : vector<32x131xf32>
    %cst_7 = arith.constant 0.000000e+00 : f32
    %11 = vector.broadcast %cst_7 : f32 to vector<32x131xf32>
    %12 = arith.cmpf ogt, %10, %11 : vector<32x131xf32>
    %cst_8 = arith.constant 0.000000e+00 : f32
    %13 = vector.broadcast %cst_8 : f32 to vector<32x131xf32>
    %14 = arith.minimumf %10, %13 : vector<32x131xf32>
    %15 = math.exp %14 : vector<32x131xf32>
    %cst_9 = arith.constant 1.000000e+00 : f32
    %16 = vector.broadcast %cst_9 : f32 to vector<32x131xf32>
    %17 = arith.subf %15, %16 : vector<32x131xf32>
    %18 = arith.select %12, %10, %17 : vector<32x131xi1>, vector<32x131xf32>
    %19 = arith.truncf %18 : vector<32x131xf32> to vector<32x131xbf16>
    %20 = vector.extract_strided_slice %19 {offsets = [0, 0], sizes = [32, 130], strides = [1, 1]} : vector<32x131xbf16> to vector<32x130xbf16>
    %21 = vector.extract_strided_slice %19 {offsets = [0, 1], sizes = [32, 130], strides = [1, 1]} : vector<32x131xbf16> to vector<32x130xbf16>
    %22 = tpu.concatenate %20, %21 in 0 : vector<32x130xbf16>, vector<32x130xbf16> -> vector<64x130xbf16>
    %c0_10 = arith.constant 0 : index
    %c0_11 = arith.constant 0 : index
    %23 = vector.load %arg5[%c0_10, %c0_11] : memref<32x64xbf16, #tpu.memory_space<vmem>>, vector<32x64xbf16>
    %cst_12 = arith.constant dense<0.000000e+00> : vector<32x130xf32>
    %24 = tpu.matmul %23, %22, %cst_12 {dimension_numbers = #tpu.dot_dimension_numbers<[1], [0], [0], [1], [0, 0, 1, 1], [], []>} : vector<32x64xbf16>, vector<64x130xbf16>, vector<32x130xf32> -> vector<32x130xf32>
    %c0_13 = arith.constant 0 : index
    %c0_14 = arith.constant 0 : index
    %25 = vector.load %arg6[%c0_13, %c0_14] : memref<32x1xf32, #tpu.memory_space<vmem>>, vector<32x1xf32>
    %26 = vector.broadcast %25 : vector<32x1xf32> to vector<32x130xf32>
    %27 = arith.addf %24, %26 : vector<32x130xf32>
    %cst_15 = arith.constant 0.000000e+00 : f32
    %28 = vector.broadcast %cst_15 : f32 to vector<32x130xf32>
    %29 = arith.cmpf ogt, %27, %28 : vector<32x130xf32>
    %cst_16 = arith.constant 0.000000e+00 : f32
    %30 = vector.broadcast %cst_16 : f32 to vector<32x130xf32>
    %31 = arith.minimumf %27, %30 : vector<32x130xf32>
    %32 = math.exp %31 : vector<32x130xf32>
    %cst_17 = arith.constant 1.000000e+00 : f32
    %33 = vector.broadcast %cst_17 : f32 to vector<32x130xf32>
    %34 = arith.subf %32, %33 : vector<32x130xf32>
    %35 = arith.select %29, %27, %34 : vector<32x130xi1>, vector<32x130xf32>
    %36 = arith.truncf %35 : vector<32x130xf32> to vector<32x130xbf16>
    %37 = vector.extract_strided_slice %36 {offsets = [0, 0], sizes = [32, 128], strides = [1, 1]} : vector<32x130xbf16> to vector<32x128xbf16>
    %38 = vector.extract_strided_slice %36 {offsets = [0, 1], sizes = [32, 128], strides = [1, 1]} : vector<32x130xbf16> to vector<32x128xbf16>
    %39 = vector.extract_strided_slice %36 {offsets = [0, 2], sizes = [32, 128], strides = [1, 1]} : vector<32x130xbf16> to vector<32x128xbf16>
    %40 = tpu.concatenate %37, %38, %39 in 0 : vector<32x128xbf16>, vector<32x128xbf16>, vector<32x128xbf16> -> vector<96x128xbf16>
    %c0_18 = arith.constant 0 : index
    %c0_19 = arith.constant 0 : index
    %41 = vector.load %arg7[%c0_18, %c0_19] : memref<32x96xbf16, #tpu.memory_space<vmem>>, vector<32x96xbf16>
    %cst_20 = arith.constant dense<0.000000e+00> : vector<32x128xf32>
    %42 = tpu.matmul %41, %40, %cst_20 {dimension_numbers = #tpu.dot_dimension_numbers<[1], [0], [0], [1], [0, 0, 1, 1], [], []>} : vector<32x96xbf16>, vector<96x128xbf16>, vector<32x128xf32> -> vector<32x128xf32>
    %c0_21 = arith.constant 0 : index
    %c0_22 = arith.constant 0 : index
    %43 = vector.load %arg8[%c0_21, %c0_22] : memref<32x1xf32, #tpu.memory_space<vmem>>, vector<32x1xf32>
    %44 = vector.broadcast %43 : vector<32x1xf32> to vector<32x128xf32>
    %45 = arith.addf %42, %44 : vector<32x128xf32>
    %c0_23 = arith.constant 0 : index
    %c0_24 = arith.constant 0 : index
    %c0_25 = arith.constant 0 : index
    %46 = vector.load %arg9[%c0_23, %c0_24, %c0_25] : memref<4x64x32xf32, #tpu.memory_space<vmem>>, vector<1x64x32xf32>
    %47 = vector.shape_cast %46 : vector<1x64x32xf32> to vector<64x32xf32>
    %cst_26 = arith.constant dense<0.000000e+00> : vector<64x128xf32>
    %48 = tpu.matmul %47, %45, %cst_26 {dimension_numbers = #tpu.dot_dimension_numbers<[1], [0], [0], [1], [0, 0, 1, 1], [], []>} : vector<64x32xf32>, vector<32x128xf32>, vector<64x128xf32> -> vector<64x128xf32>
    %c0_27 = arith.constant 0 : index
    %c0_28 = arith.constant 0 : index
    %c0_29 = arith.constant 0 : index
    %49 = vector.load %arg10[%c0_27, %c0_28, %c0_29] : memref<4x64x1xf32, #tpu.memory_space<vmem>>, vector<1x64x1xf32>
    %50 = vector.shape_cast %49 : vector<1x64x1xf32> to vector<64x1xf32>
    %cst_30 = arith.constant 2.000000e+00 : f32
    %51 = vector.broadcast %cst_30 : f32 to vector<64x128xf32>
    %52 = arith.mulf %51, %48 : vector<64x128xf32>
    %53 = vector.broadcast %50 : vector<64x1xf32> to vector<64x128xf32>
    %54 = arith.subf %53, %52 : vector<64x128xf32>
    %cst_31 = arith.constant dense<0x7F800000> : vector<128xf32>
    %55 = vector.multi_reduction <minimumf>, %54, %cst_31 [0] : vector<64x128xf32> to vector<128xf32>
    %56 = vector.shape_cast %55 : vector<128xf32> to vector<1x128xf32>
    %57 = tpu.iota {dimensions = array<i32: 0>} : vector<64x128xi32>
    %58 = vector.broadcast %56 : vector<1x128xf32> to vector<64x128xf32>
    %59 = arith.cmpf oeq, %54, %58 : vector<64x128xf32>
    %c2147483647_i32 = arith.constant 2147483647 : i32
    %60 = vector.broadcast %c2147483647_i32 : i32 to vector<64x128xi32>
    %61 = arith.select %59, %57, %60 : vector<64x128xi1>, vector<64x128xi32>
    %cst_32 = arith.constant dense<2147483647> : vector<128xi32>
    %62 = vector.multi_reduction <minsi>, %61, %cst_32 [0] : vector<64x128xi32> to vector<128xi32>
    %c0_33 = arith.constant 0 : index
    %c0_34 = arith.constant 0 : index
    %c0_35 = arith.constant 0 : index
    %63 = vector.load %arg11[%c0_33, %c0_34, %c0_35] : memref<1x4x128xi32, #tpu.memory_space<vmem>>, vector<1x1x128xi32>
    %64 = vector.shape_cast %63 : vector<1x1x128xi32> to vector<128xi32>
    %65 = vector.shape_cast %62 : vector<128xi32> to vector<1x1x128xi32>
    tpu.vector_store %arg11[%c0_33, %c0_34, %c0_35], %65 {strides = array<i32>} : memref<1x4x128xi32, #tpu.memory_space<vmem>>, vector<1x1x128xi32>,
    %66 = vector.shape_cast %62 : vector<128xi32> to vector<1x128xi32>
    %67 = vector.broadcast %66 : vector<1x128xi32> to vector<64x128xi32>
    %68 = arith.cmpi eq, %57, %67 : vector<64x128xi32>
    %69 = arith.extui %68 : vector<64x128xi1> to vector<64x128xi32>
    %70 = arith.sitofp %69 : vector<64x128xi32> to vector<64x128xf32>
    %cst_36 = arith.constant dense<0.000000e+00> : vector<32x128xf32>
    %71 = tpu.matmul %47, %70, %cst_36 {dimension_numbers = #tpu.dot_dimension_numbers<[0], [0], [1], [1], [0, 1, 1, 1], [], []>} : vector<64x32xf32>, vector<64x128xf32>, vector<32x128xf32> -> vector<32x128xf32>
    %72 = arith.subf %45, %71 : vector<32x128xf32>
    %c1 = arith.constant 1 : index
    %c0_37 = arith.constant 0 : index
    %c0_38 = arith.constant 0 : index
    %73 = vector.load %arg9[%c1, %c0_37, %c0_38] : memref<4x64x32xf32, #tpu.memory_space<vmem>>, vector<1x64x32xf32>
    %74 = vector.shape_cast %73 : vector<1x64x32xf32> to vector<64x32xf32>
    %cst_39 = arith.constant dense<0.000000e+00> : vector<64x128xf32>
    %75 = tpu.matmul %74, %72, %cst_39 {dimension_numbers = #tpu.dot_dimension_numbers<[1], [0], [0], [1], [0, 0, 1, 1], [], []>} : vector<64x32xf32>, vector<32x128xf32>, vector<64x128xf32> -> vector<64x128xf32>
    %c1_40 = arith.constant 1 : index
    %c0_41 = arith.constant 0 : index
    %c0_42 = arith.constant 0 : index
    %76 = vector.load %arg10[%c1_40, %c0_41, %c0_42] : memref<4x64x1xf32, #tpu.memory_space<vmem>>, vector<1x64x1xf32>
    %77 = vector.shape_cast %76 : vector<1x64x1xf32> to vector<64x1xf32>
    %cst_43 = arith.constant 2.000000e+00 : f32
    %78 = vector.broadcast %cst_43 : f32 to vector<64x128xf32>
    %79 = arith.mulf %78, %75 : vector<64x128xf32>
    %80 = vector.broadcast %77 : vector<64x1xf32> to vector<64x128xf32>
    %81 = arith.subf %80, %79 : vector<64x128xf32>
    %cst_44 = arith.constant dense<0x7F800000> : vector<128xf32>
    %82 = vector.multi_reduction <minimumf>, %81, %cst_44 [0] : vector<64x128xf32> to vector<128xf32>
    %83 = vector.shape_cast %82 : vector<128xf32> to vector<1x128xf32>
    %84 = tpu.iota {dimensions = array<i32: 0>} : vector<64x128xi32>
    %85 = vector.broadcast %83 : vector<1x128xf32> to vector<64x128xf32>
    %86 = arith.cmpf oeq, %81, %85 : vector<64x128xf32>
    %c2147483647_i32_45 = arith.constant 2147483647 : i32
    %87 = vector.broadcast %c2147483647_i32_45 : i32 to vector<64x128xi32>
    %88 = arith.select %86, %84, %87 : vector<64x128xi1>, vector<64x128xi32>
    %cst_46 = arith.constant dense<2147483647> : vector<128xi32>
    %89 = vector.multi_reduction <minsi>, %88, %cst_46 [0] : vector<64x128xi32> to vector<128xi32>
    %c0_47 = arith.constant 0 : index
    %c1_48 = arith.constant 1 : index
    %c0_49 = arith.constant 0 : index
    %90 = vector.load %arg11[%c0_47, %c1_48, %c0_49] : memref<1x4x128xi32, #tpu.memory_space<vmem>>, vector<1x1x128xi32>
    %91 = vector.shape_cast %90 : vector<1x1x128xi32> to vector<128xi32>
    %92 = vector.shape_cast %89 : vector<128xi32> to vector<1x1x128xi32>
    tpu.vector_store %arg11[%c0_47, %c1_48, %c0_49], %92 {strides = array<i32>} : memref<1x4x128xi32, #tpu.memory_space<vmem>>, vector<1x1x128xi32>,
    %93 = vector.shape_cast %89 : vector<128xi32> to vector<1x128xi32>
    %94 = vector.broadcast %93 : vector<1x128xi32> to vector<64x128xi32>
    %95 = arith.cmpi eq, %84, %94 : vector<64x128xi32>
    %96 = arith.extui %95 : vector<64x128xi1> to vector<64x128xi32>
    %97 = arith.sitofp %96 : vector<64x128xi32> to vector<64x128xf32>
    %cst_50 = arith.constant dense<0.000000e+00> : vector<32x128xf32>
    %98 = tpu.matmul %74, %97, %cst_50 {dimension_numbers = #tpu.dot_dimension_numbers<[0], [0], [1], [1], [0, 1, 1, 1], [], []>} : vector<64x32xf32>, vector<64x128xf32>, vector<32x128xf32> -> vector<32x128xf32>
    %99 = arith.subf %72, %98 : vector<32x128xf32>
    %c2 = arith.constant 2 : index
    %c0_51 = arith.constant 0 : index
    %c0_52 = arith.constant 0 : index
    %100 = vector.load %arg9[%c2, %c0_51, %c0_52] : memref<4x64x32xf32, #tpu.memory_space<vmem>>, vector<1x64x32xf32>
    %101 = vector.shape_cast %100 : vector<1x64x32xf32> to vector<64x32xf32>
    %cst_53 = arith.constant dense<0.000000e+00> : vector<64x128xf32>
    %102 = tpu.matmul %101, %99, %cst_53 {dimension_numbers = #tpu.dot_dimension_numbers<[1], [0], [0], [1], [0, 0, 1, 1], [], []>} : vector<64x32xf32>, vector<32x128xf32>, vector<64x128xf32> -> vector<64x128xf32>
    %c2_54 = arith.constant 2 : index
    %c0_55 = arith.constant 0 : index
    %c0_56 = arith.constant 0 : index
    %103 = vector.load %arg10[%c2_54, %c0_55, %c0_56] : memref<4x64x1xf32, #tpu.memory_space<vmem>>, vector<1x64x1xf32>
    %104 = vector.shape_cast %103 : vector<1x64x1xf32> to vector<64x1xf32>
    %cst_57 = arith.constant 2.000000e+00 : f32
    %105 = vector.broadcast %cst_57 : f32 to vector<64x128xf32>
    %106 = arith.mulf %105, %102 : vector<64x128xf32>
    %107 = vector.broadcast %104 : vector<64x1xf32> to vector<64x128xf32>
    %108 = arith.subf %107, %106 : vector<64x128xf32>
    %cst_58 = arith.constant dense<0x7F800000> : vector<128xf32>
    %109 = vector.multi_reduction <minimumf>, %108, %cst_58 [0] : vector<64x128xf32> to vector<128xf32>
    %110 = vector.shape_cast %109 : vector<128xf32> to vector<1x128xf32>
    %111 = tpu.iota {dimensions = array<i32: 0>} : vector<64x128xi32>
    %112 = vector.broadcast %110 : vector<1x128xf32> to vector<64x128xf32>
    %113 = arith.cmpf oeq, %108, %112 : vector<64x128xf32>
    %c2147483647_i32_59 = arith.constant 2147483647 : i32
    %114 = vector.broadcast %c2147483647_i32_59 : i32 to vector<64x128xi32>
    %115 = arith.select %113, %111, %114 : vector<64x128xi1>, vector<64x128xi32>
    %cst_60 = arith.constant dense<2147483647> : vector<128xi32>
    %116 = vector.multi_reduction <minsi>, %115, %cst_60 [0] : vector<64x128xi32> to vector<128xi32>
    %c0_61 = arith.constant 0 : index
    %c2_62 = arith.constant 2 : index
    %c0_63 = arith.constant 0 : index
    %117 = vector.load %arg11[%c0_61, %c2_62, %c0_63] : memref<1x4x128xi32, #tpu.memory_space<vmem>>, vector<1x1x128xi32>
    %118 = vector.shape_cast %117 : vector<1x1x128xi32> to vector<128xi32>
    %119 = vector.shape_cast %116 : vector<128xi32> to vector<1x1x128xi32>
    tpu.vector_store %arg11[%c0_61, %c2_62, %c0_63], %119 {strides = array<i32>} : memref<1x4x128xi32, #tpu.memory_space<vmem>>, vector<1x1x128xi32>,
    %120 = vector.shape_cast %116 : vector<128xi32> to vector<1x128xi32>
    %121 = vector.broadcast %120 : vector<1x128xi32> to vector<64x128xi32>
    %122 = arith.cmpi eq, %111, %121 : vector<64x128xi32>
    %123 = arith.extui %122 : vector<64x128xi1> to vector<64x128xi32>
    %124 = arith.sitofp %123 : vector<64x128xi32> to vector<64x128xf32>
    %cst_64 = arith.constant dense<0.000000e+00> : vector<32x128xf32>
    %125 = tpu.matmul %101, %124, %cst_64 {dimension_numbers = #tpu.dot_dimension_numbers<[0], [0], [1], [1], [0, 1, 1, 1], [], []>} : vector<64x32xf32>, vector<64x128xf32>, vector<32x128xf32> -> vector<32x128xf32>
    %126 = arith.subf %99, %125 : vector<32x128xf32>
    %c3 = arith.constant 3 : index
    %c0_65 = arith.constant 0 : index
    %c0_66 = arith.constant 0 : index
    %127 = vector.load %arg9[%c3, %c0_65, %c0_66] : memref<4x64x32xf32, #tpu.memory_space<vmem>>, vector<1x64x32xf32>
    %128 = vector.shape_cast %127 : vector<1x64x32xf32> to vector<64x32xf32>
    %cst_67 = arith.constant dense<0.000000e+00> : vector<64x128xf32>
    %129 = tpu.matmul %128, %126, %cst_67 {dimension_numbers = #tpu.dot_dimension_numbers<[1], [0], [0], [1], [0, 0, 1, 1], [], []>} : vector<64x32xf32>, vector<32x128xf32>, vector<64x128xf32> -> vector<64x128xf32>
    %c3_68 = arith.constant 3 : index
    %c0_69 = arith.constant 0 : index
    %c0_70 = arith.constant 0 : index
    %130 = vector.load %arg10[%c3_68, %c0_69, %c0_70] : memref<4x64x1xf32, #tpu.memory_space<vmem>>, vector<1x64x1xf32>
    %131 = vector.shape_cast %130 : vector<1x64x1xf32> to vector<64x1xf32>
    %cst_71 = arith.constant 2.000000e+00 : f32
    %132 = vector.broadcast %cst_71 : f32 to vector<64x128xf32>
    %133 = arith.mulf %132, %129 : vector<64x128xf32>
    %134 = vector.broadcast %131 : vector<64x1xf32> to vector<64x128xf32>
    %135 = arith.subf %134, %133 : vector<64x128xf32>
    %cst_72 = arith.constant dense<0x7F800000> : vector<128xf32>
    %136 = vector.multi_reduction <minimumf>, %135, %cst_72 [0] : vector<64x128xf32> to vector<128xf32>
    %137 = vector.shape_cast %136 : vector<128xf32> to vector<1x128xf32>
    %138 = tpu.iota {dimensions = array<i32: 0>} : vector<64x128xi32>
    %139 = vector.broadcast %137 : vector<1x128xf32> to vector<64x128xf32>
    %140 = arith.cmpf oeq, %135, %139 : vector<64x128xf32>
    %c2147483647_i32_73 = arith.constant 2147483647 : i32
    %141 = vector.broadcast %c2147483647_i32_73 : i32 to vector<64x128xi32>
    %142 = arith.select %140, %138, %141 : vector<64x128xi1>, vector<64x128xi32>
    %cst_74 = arith.constant dense<2147483647> : vector<128xi32>
    %143 = vector.multi_reduction <minsi>, %142, %cst_74 [0] : vector<64x128xi32> to vector<128xi32>
    %c0_75 = arith.constant 0 : index
    %c3_76 = arith.constant 3 : index
    %c0_77 = arith.constant 0 : index
    %144 = vector.load %arg11[%c0_75, %c3_76, %c0_77] : memref<1x4x128xi32, #tpu.memory_space<vmem>>, vector<1x1x128xi32>
    %145 = vector.shape_cast %144 : vector<1x1x128xi32> to vector<128xi32>
    %146 = vector.shape_cast %143 : vector<128xi32> to vector<1x1x128xi32>
    tpu.vector_store %arg11[%c0_75, %c3_76, %c0_77], %146 {strides = array<i32>} : memref<1x4x128xi32, #tpu.memory_space<vmem>>, vector<1x1x128xi32>,
    return
  }
  func.func @transform_0(%arg0: i32, %arg1: i32) -> (i32, i32, i32, i32) {
    %c0_i32 = arith.constant 0 : i32
    %c0_i32_0 = arith.constant 0 : i32
    %c0_i32_1 = arith.constant 0 : i32
    return %arg0, %arg1, %c0_i32, %c0_i32_0 : i32, i32, i32, i32
  }
  func.func @transform_1(%arg0: i32, %arg1: i32) -> (i32, i32) {
    %c0_i32 = arith.constant 0 : i32
    %c0_i32_0 = arith.constant 0 : i32
    %c0_i32_1 = arith.constant 0 : i32
    return %c0_i32, %c0_i32_0 : i32, i32
  }
  func.func @transform_2(%arg0: i32, %arg1: i32) -> (i32, i32) {
    %c0_i32 = arith.constant 0 : i32
    %c0_i32_0 = arith.constant 0 : i32
    %c0_i32_1 = arith.constant 0 : i32
    return %c0_i32, %c0_i32_0 : i32, i32
  }
  func.func @transform_3(%arg0: i32, %arg1: i32) -> (i32, i32) {
    %c0_i32 = arith.constant 0 : i32
    %c0_i32_0 = arith.constant 0 : i32
    %c0_i32_1 = arith.constant 0 : i32
    return %c0_i32, %c0_i32_0 : i32, i32
  }
  func.func @transform_4(%arg0: i32, %arg1: i32) -> (i32, i32) {
    %c0_i32 = arith.constant 0 : i32
    %c0_i32_0 = arith.constant 0 : i32
    %c0_i32_1 = arith.constant 0 : i32
    return %c0_i32, %c0_i32_0 : i32, i32
  }
  func.func @transform_5(%arg0: i32, %arg1: i32) -> (i32, i32) {
    %c0_i32 = arith.constant 0 : i32
    %c0_i32_0 = arith.constant 0 : i32
    %c0_i32_1 = arith.constant 0 : i32
    return %c0_i32, %c0_i32_0 : i32, i32
  }
  func.func @transform_6(%arg0: i32, %arg1: i32) -> (i32, i32) {
    %c0_i32 = arith.constant 0 : i32
    %c0_i32_0 = arith.constant 0 : i32
    %c0_i32_1 = arith.constant 0 : i32
    return %c0_i32, %c0_i32_0 : i32, i32
  }
  func.func @transform_7(%arg0: i32, %arg1: i32) -> (i32, i32, i32) {
    %c0_i32 = arith.constant 0 : i32
    %c0_i32_0 = arith.constant 0 : i32
    %c0_i32_1 = arith.constant 0 : i32
    %c0_i32_2 = arith.constant 0 : i32
    return %c0_i32, %c0_i32_0, %c0_i32_1 : i32, i32, i32
  }
  func.func @transform_8(%arg0: i32, %arg1: i32) -> (i32, i32, i32) {
    %c0_i32 = arith.constant 0 : i32
    %c0_i32_0 = arith.constant 0 : i32
    %c0_i32_1 = arith.constant 0 : i32
    %c0_i32_2 = arith.constant 0 : i32
    return %c0_i32, %c0_i32_0, %c0_i32_1 : i32, i32, i32
  }
  func.func @transform_9(%arg0: i32, %arg1: i32) -> (i32, i32, i32) {
    %c0_i32 = arith.constant 0 : i32
    %c0_i32_0 = arith.constant 0 : i32
    return %arg0, %c0_i32, %arg1 : i32, i32, i32
  }
}

</mosaic_0001>

<llo_original>
// kernel: tile.8
$region0: #{tile.8}
  #allocation0 [shape = 's32[1]{0}', space=sflag, size = 0x4, scoped, tag = 'scoped memory for tile.8']
  %s0 = inlined_call_operand.vmem [shape: f32[16], index: 0, kind: input, shape index: {}]
  %s1 = inlined_call_operand.vmem [shape: f32[2,16], index: 1, kind: output, shape index: {}]
  // Predicated region
  $region2: #{tile.8} parent=0 // pred_check
    _
  $region3: #{tile.8} parent=0 // pred_check_branch
    %3 = sbr.rel (0) target = $region5
  $region4: #{tile.8} parent=0 // pred_region
    _
  $region5: #{tile.8} parent=0 // pred_fallthru
    _
  %v4 = vld [vmem:[%s0] ss:$0 sm:$0xff]
  %5 = vst [vmem:[%s1] sm:$0x3] %v4

// kernel: tile.0
$region0: #{tile.0}
  %s0 = inlined_call_operand.vmem [shape: f32[2,16], index: 0, kind: input, shape index: {}]
  %s1 = inlined_call_operand.vmem [shape: f32[32,1], index: 1, kind: output, shape index: {}]
  $region1: #{tile.0} parent=0
    #allocation0 [shape = 'u8[4096]{0}', space=vmem, size = 0x1000, scoped, tag = 'scoped mem for input reshape']
    %s3 = sshll.u32 1, 2
    %s4 = ssub.s32 %s3, 1
    %v5 = vld [vmem:[%s0] sm:%s4]
    %6 = vst [vmem:[#allocation0] sm:%s4] %v5
    %v7 = vld [vmem:[#allocation0] sm:$0x3]
    %vm8 = vcmask 7168
    %9 = vst.msk [vmem:[%s1] ss:$16 sm:$0x3] %vm8, %v7
    %v10 = vld [vmem:[#allocation0] sm:$0x3]
    %11 = vrot.lane.b32.xlu0 %v10, 127
    %v12 = vpop.permute.xlu0 %11
    %vm13 = vcmask 7168
    %s14 = scalar_lea.vmem %s1, 1
    %15 = vst.msk [vmem:[%s14] ss:$16 sm:$0x3] %vm13, %v12
    %v16 = vld [vmem:[#allocation0] sm:$0x3]
    %17 = vrot.lane.b32.xlu0 %v16, 126
    %v18 = vpop.permute.xlu0 %17
    %vm19 = vcmask 7168
    %s20 = scalar_lea.vmem %s1, 2
    %21 = vst.msk [vmem:[%s20] ss:$16 sm:$0x3] %vm19, %v18
    %v22 = vld [vmem:[#allocation0] sm:$0x3]
    %23 = vrot.lane.b32.xlu0 %v22, 125
    %v24 = vpop.permute.xlu0 %23
    %vm25 = vcmask 7168
    %s26 = scalar_lea.vmem %s1, 3
    %27 = vst.msk [vmem:[%s26] ss:$16 sm:$0x3] %vm25, %v24
    %v28 = vld [vmem:[#allocation0] sm:$0x3]
    %29 = vrot.lane.b32.xlu0 %v28, 124
    %v30 = vpop.permute.xlu0 %29
    %vm31 = vcmask 7168
    %s32 = scalar_lea.vmem %s1, 4
    %33 = vst.msk [vmem:[%s32] ss:$16 sm:$0x3] %vm31, %v30
    %v34 = vld [vmem:[#allocation0] sm:$0x3]
    %35 = vrot.lane.b32.xlu0 %v34, 123
    %v36 = vpop.permute.xlu0 %35
    %vm37 = vcmask 7168
    %s38 = scalar_lea.vmem %s1, 5
    %39 = vst.msk [vmem:[%s38] ss:$16 sm:$0x3] %vm37, %v36
    %v40 = vld [vmem:[#allocation0] sm:$0x3]
    %41 = vrot.lane.b32.xlu0 %v40, 122
    %v42 = vpop.permute.xlu0 %41
    %vm43 = vcmask 7168
    %s44 = scalar_lea.vmem %s1, 6
    %45 = vst.msk [vmem:[%s44] ss:$16 sm:$0x3] %vm43, %v42
    %v46 = vld [vmem:[#allocation0] sm:$0x3]
    %47 = vrot.lane.b32.xlu0 %v46, 121
    %v48 = vpop.permute.xlu0 %47
    %vm49 = vcmask 7168
    %s50 = scalar_lea.vmem %s1, 7
    %51 = vst.msk [vmem:[%s50] ss:$16 sm:$0x3] %vm49, %v48
    %v52 = vld [vmem:[#allocation0] sm:$0x3]
    %53 = vrot.lane.b32.xlu0 %v52, 120
    %v54 = vpop.permute.xlu0 %53
    %vm55 = vcmask 7168
    %s56 = scalar_lea.vmem %s1, 8
    %57 = vst.msk [vmem:[%s56] ss:$16 sm:$0x3] %vm55, %v54
    %v58 = vld [vmem:[#allocation0] sm:$0x3]
    %59 = vrot.lane.b32.xlu0 %v58, 119
    %v60 = vpop.permute.xlu0 %59
    %vm61 = vcmask 7168
    %s62 = scalar_lea.vmem %s1, 9
    %63 = vst.msk [vmem:[%s62] ss:$16 sm:$0x3] %vm61, %v60
    %v64 = vld [vmem:[#allocation0] sm:$0x3]
    %65 = vrot.lane.b32.xlu0 %v64, 118
    %v66 = vpop.permute.xlu0 %65
    %vm67 = vcmask 7168
    %s68 = scalar_lea.vmem %s1, 10
    %69 = vst.msk [vmem:[%s68] ss:$16 sm:$0x3] %vm67, %v66
    %v70 = vld [vmem:[#allocation0] sm:$0x3]
    %71 = vrot.lane.b32.xlu0 %v70, 117
    %v72 = vpop.permute.xlu0 %71
    %vm73 = vcmask 7168
    %s74 = scalar_lea.vmem %s1, 11
    %75 = vst.msk [vmem:[%s74] ss:$16 sm:$0x3] %vm73, %v72
    %v76 = vld [vmem:[#allocation0] sm:$0x3]
    %77 = vrot.lane.b32.xlu0 %v76, 116
    %v78 = vpop.permute.xlu0 %77
    %vm79 = vcmask 7168
    %s80 = scalar_lea.vmem %s1, 12
    %81 = vst.msk [vmem:[%s80] ss:$16 sm:$0x3] %vm79, %v78
    %v82 = vld [vmem:[#allocation0] sm:$0x3]
    %83 = vrot.lane.b32.xlu0 %v82, 115
    %v84 = vpop.permute.xlu0 %83
    %vm85 = vcmask 7168
    %s86 = scalar_lea.vmem %s1, 13
    %87 = vst.msk [vmem:[%s86] ss:$16 sm:$0x3] %vm85, %v84
    %v88 = vld [vmem:[#allocation0] sm:$0x3]
    %89 = vrot.lane.b32.xlu0 %v88, 114
    %v90 = vpop.permute.xlu0 %89
    %vm91 = vcmask 7168
    %s92 = scalar_lea.vmem %s1, 14
    %93 = vst.msk [vmem:[%s92] ss:$16 sm:$0x3] %vm91, %v90
    %v94 = vld [vmem:[#allocation0] sm:$0x3]
    %95 = vrot.lane.b32.xlu0 %v94, 113
    %v96 = vpop.permute.xlu0 %95
    %vm97 = vcmask 7168
    %s98 = scalar_lea.vmem %s1, 15
    %99 = vst.msk [vmem:[%s98] ss:$16 sm:$0x3] %vm97, %v96

// kernel: audio_tokenizer_encode.1
$region0: #{audio_tokenizer_encode.1}
  #allocation0 [shape = 'u32[]', space=smem, size = 0x4, offset = 0x4, fixed_abs, tag = 'smem constant byte address 0x4 - core index']
  #allocation1 [shape = 'u32[144,128]{1,0:T(1,128)}', space=vmem, size = 0x12000, scoped, tag = 'internal scratch']
  %s0 = inlined_call_operand.vmem [shape: f32[2,2,4,132], index: 0, kind: input, shape index: {}]
  %s1 = inlined_call_operand.vmem [shape: bf16[32,8], index: 1, kind: input, shape index: {}]
  %s2 = inlined_call_operand.vmem [shape: f32[32,1], index: 2, kind: input, shape index: {}]
  %s3 = inlined_call_operand.vmem [shape: bf16[32,64], index: 3, kind: input, shape index: {}]
  %s4 = inlined_call_operand.vmem [shape: f32[32,1], index: 4, kind: input, shape index: {}]
  %s5 = inlined_call_operand.vmem [shape: bf16[32,96], index: 5, kind: input, shape index: {}]
  %s6 = inlined_call_operand.vmem [shape: f32[32,1], index: 6, kind: input, shape index: {}]
  %s7 = inlined_call_operand.vmem [shape: f32[4,64,32], index: 7, kind: input, shape index: {}]
  %s8 = inlined_call_operand.vmem [shape: f32[4,64,1], index: 8, kind: input, shape index: {}]
  %s9 = inlined_call_operand.hbm [shape: s32[2,4,256], index: 9, kind: output, shape index: {}]
  %s10 = sld [smem:[#allocation0]]
  $region69: #{audio_tokenizer_encode.1} parent=0
    _
  %s12 = ssub.s32 1, %s10
  %s13 = scalar_select 0, %s12, %s10
  $region1: #{audio_tokenizer_encode.1} parent=0
    #allocation2 [shape = 'u8[4096]{0}', space=vmem, size = 0x1000, scoped, tag = 'output window, operand 0']
    #allocation3 [shape = 's32[2]{0}', space=sflag, size = 0x8, scoped, tag = 'scoped memory for audio_tokenizer_encode.1']
    %14 = vsyncpa [#allocation3], 0
    %s15 = scalar_lea.sflag [#allocation3], 1
    %16 = vsyncpa %s15, 0
    loop: start=0, step=1, limit=6
    $region2: #{audio_tokenizer_encode.1} parent=1 // loop_pre_header
      _
    $region3: #{audio_tokenizer_encode.1} parent=1 // loop_header
      %s18 = sphi 0, %s22
      %p19 = scmp.ge.s32.totalorder %s18, 6
      %s25 = sphi 0, %s37
      %s26 = sphi 0, %s33
      %s27 = sphi 0, %s25
      %s28 = sphi 0, %s26
      %s29 = sphi 0, %s27
      %s30 = sphi 0, %s28
      %s42 = sphi 0, %s44
      %s45 = sphi 0, %s42
      %s46 = sphi 0, %s45
      %s62 = sphi 0, %s46
      %s66 = sphi 0, %s66
      %s68 = sphi 0, %s66
      %s69 = sphi 0, %s68
      %s83 = sphi 0, %s69
      %s87 = sphi 0, %s87
      %s89 = sphi 0, %s87
      %s90 = sphi 0, %s89
      %s104 = sphi 0, %s90
      %s108 = sphi 0, %s108
      %s110 = sphi 0, %s108
      %s111 = sphi 0, %s110
      %s125 = sphi 0, %s111
      %s129 = sphi 0, %s129
      %s131 = sphi 0, %s129
      %s132 = sphi 0, %s131
      %s146 = sphi 0, %s132
      %s150 = sphi 0, %s150
      %s152 = sphi 0, %s150
      %s153 = sphi 0, %s152
      %s167 = sphi 0, %s153
      %s171 = sphi 0, %s171
      %s173 = sphi 0, %s171
      %s174 = sphi 0, %s173
      %s188 = sphi 0, %s174
      %s192 = sphi 0, %s192
      %s194 = sphi 0, %s192
      %s195 = sphi 0, %s194
      %s209 = sphi 0, %s195
      %s213 = sphi 0, %s213
      %s215 = sphi 0, %s213
      %s216 = sphi 0, %s215
      %s230 = sphi 0, %s216
      %s238 = sphi 0, %s240
      %s241 = sphi 0, %s238
      %s242 = sphi 0, %s241
      %s258 = sphi 0, %s242
    $region4: #{audio_tokenizer_encode.1} parent=1 // loop_header_branch
      %21 = sbr.rel (%p19) target = $region8
    $region5: #{audio_tokenizer_encode.1} parent=1 // loop_body
      %s23 = ssub.s32 %s18, 1
      %s24 = ssub.s32 %s18, 2
      %s31 = sadd.s32 1, %s26
      %p32 = scmp.ge.s32.totalorder %s31, 2
      %s33 = scalar_select %p32, 0, %s31
      %s34 = sadd.s32 1, %s25
      %s35 = scalar_select %p32, %s34, %s25
      %p36 = scmp.ge.s32.totalorder %s35, 2
      %s37 = scalar_select %p36, 0, %s35
      %s38 = ssub.s32 %s25, %s37
      %s39 = ssub.s32 %s26, %s33
      %s40 = sor.u32 %s38, %s39
      %p41 = scmp.eq.s32.totalorder %s40, 0
      %s43 = sadd.s32 %s42, 1
      %s44 = scalar_select %p41, %s42, %s43
      %p47 = pneg %p41
      %p48 = scmp.eq.s32.totalorder %s18, 3
      %p49 = por %p47, %p48
      %p50 = scmp.ne.s32.totalorder %s42, %s45
      %p51 = scmp.eq.s32.totalorder %s18, 0
      %p52 = por %p50, %p51
      %p53 = scmp.ne.s32.totalorder %s42, %s45
      %p54 = scmp.eq.s32.totalorder %s23, 3
      %p55 = por %p53, %p54
      %p56 = scmp.ne.s32.totalorder %s45, %s46
      %p57 = scmp.eq.s32.totalorder %s23, 0
      %p58 = por %p56, %p57
      %p59 = scmp.ne.s32.totalorder %s45, %s46
      %p60 = scmp.eq.s32.totalorder %s24, 3
      %p61 = por %p59, %p60
      %p63 = scmp.ne.s32.totalorder %s46, %s62
      %p64 = scmp.eq.s32.totalorder %s24, 0
      %p65 = por %p63, %p64
      %s67 = sadd.s32 %s66, 1
      %p70 = scmp.eq.s32.totalorder %s18, 3
      %p71 = scmp.ne.s32.totalorder %s66, %s68
      %p72 = scmp.eq.s32.totalorder %s18, 0
      %p73 = por %p71, %p72
      %p74 = scmp.ne.s32.totalorder %s66, %s68
      %p75 = scmp.eq.s32.totalorder %s23, 3
      %p76 = por %p74, %p75
      %p77 = scmp.ne.s32.totalorder %s68, %s69
      %p78 = scmp.eq.s32.totalorder %s23, 0
      %p79 = por %p77, %p78
      %p80 = scmp.ne.s32.totalorder %s68, %s69
      %p81 = scmp.eq.s32.totalorder %s24, 3
      %p82 = por %p80, %p81
      %p84 = scmp.ne.s32.totalorder %s69, %s83
      %p85 = scmp.eq.s32.totalorder %s24, 0
      %p86 = por %p84, %p85
      %s88 = sadd.s32 %s87, 1
      %p91 = scmp.eq.s32.totalorder %s18, 3
      %p92 = scmp.ne.s32.totalorder %s87, %s89
      %p93 = scmp.eq.s32.totalorder %s18, 0
      %p94 = por %p92, %p93
      %p95 = scmp.ne.s32.totalorder %s87, %s89
      %p96 = scmp.eq.s32.totalorder %s23, 3
      %p97 = por %p95, %p96
      %p98 = scmp.ne.s32.totalorder %s89, %s90
      %p99 = scmp.eq.s32.totalorder %s23, 0
      %p100 = por %p98, %p99
      %p101 = scmp.ne.s32.totalorder %s89, %s90
      %p102 = scmp.eq.s32.totalorder %s24, 3
      %p103 = por %p101, %p102
      %p105 = scmp.ne.s32.totalorder %s90, %s104
      %p106 = scmp.eq.s32.totalorder %s24, 0
      %p107 = por %p105, %p106
      %s109 = sadd.s32 %s108, 1
      %p112 = scmp.eq.s32.totalorder %s18, 3
      %p113 = scmp.ne.s32.totalorder %s108, %s110
      %p114 = scmp.eq.s32.totalorder %s18, 0
      %p115 = por %p113, %p114
      %p116 = scmp.ne.s32.totalorder %s108, %s110
      %p117 = scmp.eq.s32.totalorder %s23, 3
      %p118 = por %p116, %p117
      %p119 = scmp.ne.s32.totalorder %s110, %s111
      %p120 = scmp.eq.s32.totalorder %s23, 0
      %p121 = por %p119, %p120
      %p122 = scmp.ne.s32.totalorder %s110, %s111
      %p123 = scmp.eq.s32.totalorder %s24, 3
      %p124 = por %p122, %p123
      %p126 = scmp.ne.s32.totalorder %s111, %s125
      %p127 = scmp.eq.s32.totalorder %s24, 0
      %p128 = por %p126, %p127
      %s130 = sadd.s32 %s129, 1
      %p133 = scmp.eq.s32.totalorder %s18, 3
      %p134 = scmp.ne.s32.totalorder %s129, %s131
      %p135 = scmp.eq.s32.totalorder %s18, 0
      %p136 = por %p134, %p135
      %p137 = scmp.ne.s32.totalorder %s129, %s131
      %p138 = scmp.eq.s32.totalorder %s23, 3
      %p139 = por %p137, %p138
      %p140 = scmp.ne.s32.totalorder %s131, %s132
      %p141 = scmp.eq.s32.totalorder %s23, 0
      %p142 = por %p140, %p141
      %p143 = scmp.ne.s32.totalorder %s131, %s132
      %p144 = scmp.eq.s32.totalorder %s24, 3
      %p145 = por %p143, %p144
      %p147 = scmp.ne.s32.totalorder %s132, %s146
      %p148 = scmp.eq.s32.totalorder %s24, 0
      %p149 = por %p147, %p148
      %s151 = sadd.s32 %s150, 1
      %p154 = scmp.eq.s32.totalorder %s18, 3
      %p155 = scmp.ne.s32.totalorder %s150, %s152
      %p156 = scmp.eq.s32.totalorder %s18, 0
      %p157 = por %p155, %p156
      %p158 = scmp.ne.s32.totalorder %s150, %s152
      %p159 = scmp.eq.s32.totalorder %s23, 3
      %p160 = por %p158, %p159
      %p161 = scmp.ne.s32.totalorder %s152, %s153
      %p162 = scmp.eq.s32.totalorder %s23, 0
      %p163 = por %p161, %p162
      %p164 = scmp.ne.s32.totalorder %s152, %s153
      %p165 = scmp.eq.s32.totalorder %s24, 3
      %p166 = por %p164, %p165
      %p168 = scmp.ne.s32.totalorder %s153, %s167
      %p169 = scmp.eq.s32.totalorder %s24, 0
      %p170 = por %p168, %p169
      %s172 = sadd.s32 %s171, 1
      %p175 = scmp.eq.s32.totalorder %s18, 3
      %p176 = scmp.ne.s32.totalorder %s171, %s173
      %p177 = scmp.eq.s32.totalorder %s18, 0
      %p178 = por %p176, %p177
      %p179 = scmp.ne.s32.totalorder %s171, %s173
      %p180 = scmp.eq.s32.totalorder %s23, 3
      %p181 = por %p179, %p180
      %p182 = scmp.ne.s32.totalorder %s173, %s174
      %p183 = scmp.eq.s32.totalorder %s23, 0
      %p184 = por %p182, %p183
      %p185 = scmp.ne.s32.totalorder %s173, %s174
      %p186 = scmp.eq.s32.totalorder %s24, 3
      %p187 = por %p185, %p186
      %p189 = scmp.ne.s32.totalorder %s174, %s188
      %p190 = scmp.eq.s32.totalorder %s24, 0
      %p191 = por %p189, %p190
      %s193 = sadd.s32 %s192, 1
      %p196 = scmp.eq.s32.totalorder %s18, 3
      %p197 = scmp.ne.s32.totalorder %s192, %s194
      %p198 = scmp.eq.s32.totalorder %s18, 0
      %p199 = por %p197, %p198
      %p200 = scmp.ne.s32.totalorder %s192, %s194
      %p201 = scmp.eq.s32.totalorder %s23, 3
      %p202 = por %p200, %p201
      %p203 = scmp.ne.s32.totalorder %s194, %s195
      %p204 = scmp.eq.s32.totalorder %s23, 0
      %p205 = por %p203, %p204
      %p206 = scmp.ne.s32.totalorder %s194, %s195
      %p207 = scmp.eq.s32.totalorder %s24, 3
      %p208 = por %p206, %p207
      %p210 = scmp.ne.s32.totalorder %s195, %s209
      %p211 = scmp.eq.s32.totalorder %s24, 0
      %p212 = por %p210, %p211
      %s214 = sadd.s32 %s213, 1
      %p217 = scmp.eq.s32.totalorder %s18, 3
      %p218 = scmp.ne.s32.totalorder %s213, %s215
      %p219 = scmp.eq.s32.totalorder %s18, 0
      %p220 = por %p218, %p219
      %p221 = scmp.ne.s32.totalorder %s213, %s215
      %p222 = scmp.eq.s32.totalorder %s23, 3
      %p223 = por %p221, %p222
      %p224 = scmp.ne.s32.totalorder %s215, %s216
      %p225 = scmp.eq.s32.totalorder %s23, 0
      %p226 = por %p224, %p225
      %p227 = scmp.ne.s32.totalorder %s215, %s216
      %p228 = scmp.eq.s32.totalorder %s24, 3
      %p229 = por %p227, %p228
      %p231 = scmp.ne.s32.totalorder %s216, %s230
      %p232 = scmp.eq.s32.totalorder %s24, 0
      %p233 = por %p231, %p232
      %s234 = ssub.s32 %s25, %s37
      %s235 = ssub.s32 %s26, %s33
      %s236 = sor.u32 %s234, %s235
      %p237 = scmp.eq.s32.totalorder %s236, 0
      %s239 = sadd.s32 %s238, 1
      %s240 = scalar_select %p237, %s238, %s239
      %p243 = pneg %p237
      %p244 = scmp.eq.s32.totalorder %s18, 3
      %p245 = por %p243, %p244
      %p246 = scmp.ne.s32.totalorder %s238, %s241
      %p247 = scmp.eq.s32.totalorder %s18, 0
      %p248 = por %p246, %p247
      %p249 = scmp.ne.s32.totalorder %s238, %s241
      %p250 = scmp.eq.s32.totalorder %s23, 3
      %p251 = por %p249, %p250
      %p252 = scmp.ne.s32.totalorder %s241, %s242
      %p253 = scmp.eq.s32.totalorder %s23, 0
      %p254 = por %p252, %p253
      %p255 = scmp.ne.s32.totalorder %s241, %s242
      %p256 = scmp.eq.s32.totalorder %s24, 3
      %p257 = por %p255, %p256
      %p259 = scmp.ne.s32.totalorder %s242, %s258
      %p260 = scmp.eq.s32.totalorder %s24, 0
      %p261 = por %p259, %p260
      %p262 = scmp.le.s32.totalorder 1, %s18
      %p263 = scmp.lt.s32.totalorder %s18, 5
      %p264 = pnand %p262, %p263
      %p265 = pneg %p264
      // Predicated region
      $region9: #{audio_tokenizer_encode.1} parent=5 // pred_check
        _
      $region10: #{audio_tokenizer_encode.1} parent=5 // pred_check_branch
        %267 = sbr.rel (%p264) target = $region12
      $region11: #{audio_tokenizer_encode.1} parent=5 // pred_region
        %s268 = ssub.s32 %s18, 1
        // Predicated region
        $region13: #{audio_tokenizer_encode.1} parent=11 // pred_check
          %p269 = pneg %p79
        $region14: #{audio_tokenizer_encode.1} parent=11 // pred_check_branch
          %271 = sbr.rel (%p269) target = $region16
        $region15: #{audio_tokenizer_encode.1} parent=11 // pred_region
          _
        $region16: #{audio_tokenizer_encode.1} parent=11 // pred_fallthru
          _
        // Predicated region
        $region17: #{audio_tokenizer_encode.1} parent=11 // pred_check
          %p272 = pneg %p100
        $region18: #{audio_tokenizer_encode.1} parent=11 // pred_check_branch
          %274 = sbr.rel (%p272) target = $region20
        $region19: #{audio_tokenizer_encode.1} parent=11 // pred_region
          _
        $region20: #{audio_tokenizer_encode.1} parent=11 // pred_fallthru
          _
        // Predicated region
        $region21: #{audio_tokenizer_encode.1} parent=11 // pred_check
          %p275 = pneg %p121
        $region22: #{audio_tokenizer_encode.1} parent=11 // pred_check_branch
          %277 = sbr.rel (%p275) target = $region24
        $region23: #{audio_tokenizer_encode.1} parent=11 // pred_region
          _
        $region24: #{audio_tokenizer_encode.1} parent=11 // pred_fallthru
          _
        // Predicated region
        $region25: #{audio_tokenizer_encode.1} parent=11 // pred_check
          %p278 = pneg %p142
        $region26: #{audio_tokenizer_encode.1} parent=11 // pred_check_branch
          %280 = sbr.rel (%p278) target = $region28
        $region27: #{audio_tokenizer_encode.1} parent=11 // pred_region
          _
        $region28: #{audio_tokenizer_encode.1} parent=11 // pred_fallthru
          _
        // Predicated region
        $region29: #{audio_tokenizer_encode.1} parent=11 // pred_check
          %p281 = pneg %p163
        $region30: #{audio_tokenizer_encode.1} parent=11 // pred_check_branch
          %283 = sbr.rel (%p281) target = $region32
        $region31: #{audio_tokenizer_encode.1} parent=11 // pred_region
          _
        $region32: #{audio_tokenizer_encode.1} parent=11 // pred_fallthru
          _
        // Predicated region
        $region33: #{audio_tokenizer_encode.1} parent=11 // pred_check
          %p284 = pneg %p184
        $region34: #{audio_tokenizer_encode.1} parent=11 // pred_check_branch
          %286 = sbr.rel (%p284) target = $region36
        $region35: #{audio_tokenizer_encode.1} parent=11 // pred_region
          _
        $region36: #{audio_tokenizer_encode.1} parent=11 // pred_fallthru
          _
        // Predicated region
        $region37: #{audio_tokenizer_encode.1} parent=11 // pred_check
          %p287 = pneg %p205
        $region38: #{audio_tokenizer_encode.1} parent=11 // pred_check_branch
          %289 = sbr.rel (%p287) target = $region40
        $region39: #{audio_tokenizer_encode.1} parent=11 // pred_region
          _
        $region40: #{audio_tokenizer_encode.1} parent=11 // pred_fallthru
          _
        // Predicated region
        $region41: #{audio_tokenizer_encode.1} parent=11 // pred_check
          %p290 = pneg %p226
        $region42: #{audio_tokenizer_encode.1} parent=11 // pred_check_branch
          %292 = sbr.rel (%p290) target = $region44
        $region43: #{audio_tokenizer_encode.1} parent=11 // pred_region
          _
        $region44: #{audio_tokenizer_encode.1} parent=11 // pred_fallthru
          _
      $region12: #{audio_tokenizer_encode.1} parent=5 // pred_fallthru
        _
      %p293 = scmp.lt.s32.totalorder %s18, 4
      // Predicated region
      $region45: #{audio_tokenizer_encode.1} parent=5 // pred_check
        %p294 = pneg %p293
      $region46: #{audio_tokenizer_encode.1} parent=5 // pred_check_branch
        %296 = sbr.rel (%p294) target = $region48
      $region47: #{audio_tokenizer_encode.1} parent=5 // pred_region
        // Predicated region
        $region49: #{audio_tokenizer_encode.1} parent=47 // pred_check
          %p297 = pneg %p52
        $region50: #{audio_tokenizer_encode.1} parent=47 // pred_check_branch
          %299 = sbr.rel (%p297) target = $region52
        $region51: #{audio_tokenizer_encode.1} parent=47 // pred_region
          %p300 = scmp.lt.s32.totalorder %s25, 1
          %s301 = scalar_select %p300, %s25, 1
          %p302 = scmp.lt.s32.totalorder %s26, 1
          %s303 = scalar_select %p302, %s26, 1
          %s304 = smul.addr %s303, 2
          %s305 = smul.addr %s301, 4
          %s306 = sadd.s32 %s304, %s305
          %s307 = smul.addr %s306, 4
          %s308 = scalar_lea.vmem %s0, %s307
        $region52: #{audio_tokenizer_encode.1} parent=47 // pred_fallthru
          _
      $region48: #{audio_tokenizer_encode.1} parent=5 // pred_fallthru
        _
      %p309 = scmp.le.s32.totalorder 1, %s18
      %p310 = scmp.lt.s32.totalorder %s18, 5
      %p311 = pnand %p309, %p310
      %p312 = pneg %p311
      // Predicated region
      $region53: #{audio_tokenizer_encode.1} parent=5 // pred_check
        _
      $region54: #{audio_tokenizer_encode.1} parent=5 // pred_check_branch
        %314 = sbr.rel (%p311) target = $region56
      $region55: #{audio_tokenizer_encode.1} parent=5 // pred_region
        %s315 = ssub.s32 %s18, 1
        %p316 = scmp.lt.s32.totalorder %s27, 1
        %s317 = scalar_select %p316, %s27, 1
        %p318 = scmp.lt.s32.totalorder %s28, 1
        %s319 = scalar_select %p318, %s28, 1
        %s320 = smul.addr %s319, 2
        %s321 = smul.addr %s317, 4
        %s322 = sadd.s32 %s320, %s321
        %s323 = smul.addr %s322, 4
        %s324 = scalar_lea.vmem %s0, %s323
        %p325 = pneg %p58
        %p326 = pneg %p55
        %p327 = pneg %p79
        %p328 = pneg %p76
        %p329 = pneg %p100
        %p330 = pneg %p97
        %p331 = pneg %p121
        %p332 = pneg %p118
        %p333 = pneg %p142
        %p334 = pneg %p139
        %p335 = pneg %p163
        %p336 = pneg %p160
        %p337 = pneg %p184
        %p338 = pneg %p181
        %p339 = pneg %p205
        %p340 = pneg %p202
        %p341 = pneg %p226
        %p342 = pneg %p223
        %p343 = pneg %p254
        %p344 = pneg %p251
        %s345 = sand.u32 %s241, 1
        %s346 = scalar_lea.sflag [#allocation3], %s345
        %s347 = sand.u32 %s241, 1
        %s348 = smul.addr %s347, 4
        %s349 = scalar_lea.vmem [#allocation2], %s348
        %p350 = scmp.lt.s32.totalorder %s27, 1
        %s351 = scalar_select %p350, %s27, 1
        %p352 = scmp.lt.s32.totalorder %s28, 1
        %s353 = scalar_select %p352, %s28, 1
        %s354 = smul.addr %s353, 2
        %s355 = smul.addr %s351, 4
        %s356 = sadd.s32 %s354, %s355
        %s357 = smul.addr %s356, 4
        %s358 = scalar_lea.vmem %s0, %s357
        %v360 = vld [vmem:[%s358] sm:$0xff]
        %v362 = vcombine.high %v360, %v360
        %v364 = vpack.c.bf16 %v360, %v360
        %v365 = vpack.c.bf16 %v362, %v362
        %v368 = vrot.slane %v364, 6
        %v369 = vrot.slane %v365, 6
        %370 = vrot.lane.b32.xlu0 %v368, 127
        %v371 = vpop.permute.xlu0 %370
        %372 = vrot.lane.b32.xlu0 %v369, 127
        %v373 = vpop.permute.xlu0 %372
        %vm374 = vcmask 1039360
        %v375 = vsel %vm374, %v371, %v373
        %vm376 = vcmask 1041408
        %v379 = vsel %vm376, %v364, %v375
        %v382 = vsel %vm376, %v365, %v373
        %v383 = vld [vmem:[%s1] sm:$0xf]
        %v384 = vld [vmem:[%s1 + $0x4] sm:$0xf]
        %v385 = vld [vmem:[%s1 + $0x8] sm:$0xf]
        %v386 = vld [vmem:[%s1 + $0xc] sm:$0xf]
        %v387 = vld [vmem:[%s2] sm:$0xff]
        %v388 = vld [vmem:[%s2 + $0x8] sm:$0xff]
        %v389 = vld [vmem:[%s2 + $0x10] sm:$0xff]
        %v390 = vld [vmem:[%s2 + $0x18] sm:$0xff]
        %392 = vset.pattern.permute.xlu0 0
        %393 = vperm.xlu0 %392, %v387
        %v394 = vpop.permute.xlu0 %393
        %397 = vset.pattern.permute.xlu0 0
        %398 = vperm.xlu0 %397, %v388
        %v399 = vpop.permute.xlu0 %398
        %402 = vset.pattern.permute.xlu0 0
        %403 = vperm.xlu0 %402, %v389
        %v404 = vpop.permute.xlu0 %403
        %407 = vset.pattern.permute.xlu0 0
        %408 = vperm.xlu0 %407, %v390
        %v409 = vpop.permute.xlu0 %408
        %v415 = vunpack.c.l.b16 %v383
        %v416 = vunpack.c.l.b16 %v384
        %v417 = vunpack.c.l.b16 %v385
        %v418 = vunpack.c.l.b16 %v386
        %v419 = vpack.c.b16 %v416, %v415
        %v420 = vpack.c.b16 %v418, %v417
        %vm421 = vcmask 64512
        %v423 = vsel %vm421, %v419, 0
        %v426 = vsel %vm421, %v420, 0
        %vm428 = vcmask 1043456
        %v429 = vsel %vm428, %v379, 0
        %v431 = vsel %vm428, %v382, 0
        %433 = vmatprep.subr.bf16.mxu0 0
        %434 = vmatpush1.bf16.msra.mxu0 0
        %435 = vmatprep.subr.bf16.mxu0 0
        %436 = vmatpush1.bf16.msra.mxu0 0
        %437 = vmatprep.subr.bf16.mxu0 0
        %438 = vmatpush1.bf16.msra.mxu0 0
        %439 = vmatprep.subr.bf16.mxu0 0
        %440 = vmatpush1.bf16.msra.mxu0 0
        %441 = vmatprep.subr.bf16.mxu0 0
        %442 = vmatpush1.bf16.msra.mxu0 0
        %443 = vmatprep.subr.bf16.mxu0 0
        %444 = vmatpush1.bf16.msra.mxu0 0
        %445 = vmatprep.subr.bf16.mxu0 0
        %446 = vmatpush1.bf16.msra.mxu0 0
        %447 = vmatprep.subr.bf16.mxu0 %v431
        %448 = vmatpush1.bf16.msra.mxu0 %v429
        %449 = vmatprep.subr.bf16.mxu0 0
        %450 = vmatpush2.bf16.msra.mxu0 0
        %451 = vmatprep.subr.bf16.mxu0 0
        %452 = vmatpush2.bf16.msra.mxu0 0
        %453 = vmatprep.subr.bf16.mxu0 0
        %454 = vmatpush2.bf16.msra.mxu0 0
        %455 = vmatprep.subr.bf16.mxu0 0
        %456 = vmatpush2.bf16.msra.mxu0 0
        %457 = vmatprep.subr.bf16.mxu0 0
        %458 = vmatpush2.bf16.msra.mxu0 0
        %459 = vmatprep.subr.bf16.mxu0 0
        %460 = vmatpush2.bf16.msra.mxu0 0
        %461 = vmatprep.subr.bf16.mxu0 0
        %462 = vmatpush2.bf16.msra.mxu0 0
        %463 = vmatprep.subr.bf16.mxu0 0
        %464 = vmatpush2.bf16.msra.mxu0 0
        %465 = vmatprep.mubr.bf16.mxu0 0
        %466 = vmatmul.mubr.bf16.gmra.mxu0 %v423
        %v467 = vpop.f32.mrf.mxu0
        %v468 = vadd.f32 %v394, %v467
        %v469 = vpop.f32.mrf.mxu0
        %v470 = vadd.f32 %v394, %v469
        %v471 = vpop.f32.mrf.mxu0
        %v472 = vadd.f32 %v399, %v471
        %v473 = vpop.f32.mrf.mxu0
        %v474 = vadd.f32 %v399, %v473
        %475 = vmatprep.mubr.bf16.mxu0 0
        %476 = vmatmul.mubr.bf16.gmra.mxu0 %v426
        %v477 = vpop.f32.mrf.mxu0
        %v478 = vadd.f32 %v404, %v477
        %v479 = vpop.f32.mrf.mxu0
        %v480 = vadd.f32 %v404, %v479
        %v481 = vpop.f32.mrf.mxu0
        %v482 = vadd.f32 %v409, %v481
        %v483 = vpop.f32.mrf.mxu0
        %v484 = vadd.f32 %v409, %v483
        %485 = vdwg.mxu0
        %vm486 = vcmp.gt.f32.partialorder %v468, 0.0
        %vm487 = vcmp.gt.f32.partialorder %v470, 0.0
        %vm488 = vcmp.gt.f32.partialorder %v472, 0.0
        %vm489 = vcmp.gt.f32.partialorder %v474, 0.0
        %vm490 = vcmp.gt.f32.partialorder %v478, 0.0
        %vm491 = vcmp.gt.f32.partialorder %v480, 0.0
        %vm492 = vcmp.gt.f32.partialorder %v482, 0.0
        %vm493 = vcmp.gt.f32.partialorder %v484, 0.0
        %v494 = vmin.f32 %v468, 0.0
        %v495 = vmin.f32 %v470, 0.0
        %v496 = vmin.f32 %v472, 0.0
        %v497 = vmin.f32 %v474, 0.0
        %v498 = vmin.f32 %v478, 0.0
        %v499 = vmin.f32 %v480, 0.0
        %v500 = vmin.f32 %v482, 0.0
        %v501 = vmin.f32 %v484, 0.0
        %v502 = vmul.f32 %v494, 1.442695
        %v503 = vpow.pop %v502
        %v504 = vmul.f32 %v495, 1.442695
        %v505 = vpow.pop %v504
        %v506 = vmul.f32 %v496, 1.442695
        %v507 = vpow.pop %v506
        %v508 = vmul.f32 %v497, 1.442695
        %v509 = vpow.pop %v508
        %v510 = vmul.f32 %v498, 1.442695
        %v511 = vpow.pop %v510
        %v512 = vmul.f32 %v499, 1.442695
        %v513 = vpow.pop %v512
        %v514 = vmul.f32 %v500, 1.442695
        %v515 = vpow.pop %v514
        %v516 = vmul.f32 %v501, 1.442695
        %v517 = vpow.pop %v516
        %v518 = vsub.f32 %v503, 1.0
        %v519 = vsub.f32 %v505, 1.0
        %v520 = vsub.f32 %v507, 1.0
        %v521 = vsub.f32 %v509, 1.0
        %v522 = vsub.f32 %v511, 1.0
        %v523 = vsub.f32 %v513, 1.0
        %v524 = vsub.f32 %v515, 1.0
        %v525 = vsub.f32 %v517, 1.0
        %v526 = vsel %vm486, %v468, %v518
        %v527 = vsel %vm487, %v470, %v519
        %v528 = vsel %vm488, %v472, %v520
        %v529 = vsel %vm489, %v474, %v521
        %v530 = vsel %vm490, %v478, %v522
        %v531 = vsel %vm491, %v480, %v523
        %v532 = vsel %vm492, %v482, %v524
        %v533 = vsel %vm493, %v484, %v525
        %v534 = vpack.c.bf16 %v528, %v526
        %v535 = vpack.c.bf16 %v529, %v527
        %v536 = vpack.c.bf16 %v532, %v530
        %v537 = vpack.c.bf16 %v533, %v531
        %542 = vrot.lane.b32.xlu0 %v534, 127
        %v543 = vpop.permute.xlu0 %542
        %544 = vrot.lane.b32.xlu0 %v535, 127
        %v545 = vpop.permute.xlu0 %544
        %546 = vrot.lane.b32.xlu0 %v536, 127
        %v547 = vpop.permute.xlu0 %546
        %548 = vrot.lane.b32.xlu0 %v537, 127
        %v549 = vpop.permute.xlu0 %548
        %v550 = vsel %vm374, %v543, %v545
        %v551 = vsel %vm374, %v547, %v549
        %v556 = vld [vmem:[%s3] sm:$0xf]
        %v557 = vld [vmem:[%s3 + $0x4] sm:$0xf]
        %v558 = vld [vmem:[%s3 + $0x8] sm:$0xf]
        %v559 = vld [vmem:[%s3 + $0xc] sm:$0xf]
        %v560 = vld [vmem:[%s4] sm:$0xff]
        %v561 = vld [vmem:[%s4 + $0x8] sm:$0xff]
        %v562 = vld [vmem:[%s4 + $0x10] sm:$0xff]
        %v563 = vld [vmem:[%s4 + $0x18] sm:$0xff]
        %565 = vset.pattern.permute.xlu0 0
        %566 = vperm.xlu0 %565, %v560
        %v567 = vpop.permute.xlu0 %566
        %570 = vset.pattern.permute.xlu0 0
        %571 = vperm.xlu0 %570, %v561
        %v572 = vpop.permute.xlu0 %571
        %575 = vset.pattern.permute.xlu0 0
        %576 = vperm.xlu0 %575, %v562
        %v577 = vpop.permute.xlu0 %576
        %580 = vset.pattern.permute.xlu0 0
        %581 = vperm.xlu0 %580, %v563
        %v582 = vpop.permute.xlu0 %581
        %v588 = vunpack.c.l.b16 %v556
        %v589 = vunpack.c.l.b16 %v557
        %v590 = vunpack.c.l.b16 %v558
        %v591 = vunpack.c.l.b16 %v559
        %v592 = vpack.c.b16 %v589, %v588
        %v593 = vpack.c.b16 %v591, %v590
        %vm594 = vcmask 523264
        %v596 = vsel %vm594, %v592, 0
        %v599 = vsel %vm594, %v593, 0
        %601 = vmatprep.subr.bf16.mxu0 0
        %602 = vmatpush1.bf16.msra.mxu0 0
        %603 = vmatprep.subr.bf16.mxu0 0
        %604 = vmatpush1.bf16.msra.mxu0 0
        %605 = vmatprep.subr.bf16.mxu0 0
        %606 = vmatpush1.bf16.msra.mxu0 0
        %607 = vmatprep.subr.bf16.mxu0 0
        %608 = vmatpush1.bf16.msra.mxu0 0
        %609 = vmatprep.subr.bf16.mxu0 %v549
        %610 = vmatpush1.bf16.msra.mxu0 %v551
        %611 = vmatprep.subr.bf16.mxu0 %v545
        %612 = vmatpush1.bf16.msra.mxu0 %v550
        %613 = vmatprep.subr.bf16.mxu0 %v537
        %614 = vmatpush1.bf16.msra.mxu0 %v536
        %615 = vmatprep.subr.bf16.mxu0 %v535
        %616 = vmatpush1.bf16.msra.mxu0 %v534
        %617 = vmatprep.subr.bf16.mxu0 0
        %618 = vmatpush2.bf16.msra.mxu0 0
        %619 = vmatprep.subr.bf16.mxu0 0
        %620 = vmatpush2.bf16.msra.mxu0 0
        %621 = vmatprep.subr.bf16.mxu0 0
        %622 = vmatpush2.bf16.msra.mxu0 0
        %623 = vmatprep.subr.bf16.mxu0 0
        %624 = vmatpush2.bf16.msra.mxu0 0
        %625 = vmatprep.subr.bf16.mxu0 0
        %626 = vmatpush2.bf16.msra.mxu0 0
        %627 = vmatprep.subr.bf16.mxu0 0
        %628 = vmatpush2.bf16.msra.mxu0 0
        %629 = vmatprep.subr.bf16.mxu0 0
        %630 = vmatpush2.bf16.msra.mxu0 0
        %631 = vmatprep.subr.bf16.mxu0 0
        %632 = vmatpush2.bf16.msra.mxu0 0
        %633 = vmatprep.mubr.bf16.mxu0 0
        %634 = vmatmul.mubr.bf16.gmra.mxu0 %v596
        %v635 = vpop.f32.mrf.mxu0
        %v636 = vadd.f32 %v567, %v635
        %v637 = vpop.f32.mrf.mxu0
        %v638 = vadd.f32 %v567, %v637
        %v639 = vpop.f32.mrf.mxu0
        %v640 = vadd.f32 %v572, %v639
        %v641 = vpop.f32.mrf.mxu0
        %v642 = vadd.f32 %v572, %v641
        %643 = vmatprep.mubr.bf16.mxu0 0
        %644 = vmatmul.mubr.bf16.gmra.mxu0 %v599
        %v645 = vpop.f32.mrf.mxu0
        %v646 = vadd.f32 %v577, %v645
        %v647 = vpop.f32.mrf.mxu0
        %v648 = vadd.f32 %v577, %v647
        %v649 = vpop.f32.mrf.mxu0
        %v650 = vadd.f32 %v582, %v649
        %v651 = vpop.f32.mrf.mxu0
        %v652 = vadd.f32 %v582, %v651
        %653 = vdwg.mxu0
        %vm654 = vcmp.gt.f32.partialorder %v636, 0.0
        %vm655 = vcmp.gt.f32.partialorder %v638, 0.0
        %vm656 = vcmp.gt.f32.partialorder %v640, 0.0
        %vm657 = vcmp.gt.f32.partialorder %v642, 0.0
        %vm658 = vcmp.gt.f32.partialorder %v646, 0.0
        %vm659 = vcmp.gt.f32.partialorder %v648, 0.0
        %vm660 = vcmp.gt.f32.partialorder %v650, 0.0
        %vm661 = vcmp.gt.f32.partialorder %v652, 0.0
        %v662 = vmin.f32 %v636, 0.0
        %v663 = vmin.f32 %v638, 0.0
        %v664 = vmin.f32 %v640, 0.0
        %v665 = vmin.f32 %v642, 0.0
        %v666 = vmin.f32 %v646, 0.0
        %v667 = vmin.f32 %v648, 0.0
        %v668 = vmin.f32 %v650, 0.0
        %v669 = vmin.f32 %v652, 0.0
        %v670 = vmul.f32 %v662, 1.442695
        %v671 = vpow.pop %v670
        %v672 = vmul.f32 %v663, 1.442695
        %v673 = vpow.pop %v672
        %v674 = vmul.f32 %v664, 1.442695
        %v675 = vpow.pop %v674
        %v676 = vmul.f32 %v665, 1.442695
        %v677 = vpow.pop %v676
        %v678 = vmul.f32 %v666, 1.442695
        %v679 = vpow.pop %v678
        %v680 = vmul.f32 %v667, 1.442695
        %v681 = vpow.pop %v680
        %v682 = vmul.f32 %v668, 1.442695
        %v683 = vpow.pop %v682
        %v684 = vmul.f32 %v669, 1.442695
        %v685 = vpow.pop %v684
        %v686 = vsub.f32 %v671, 1.0
        %v687 = vsub.f32 %v673, 1.0
        %v688 = vsub.f32 %v675, 1.0
        %v689 = vsub.f32 %v677, 1.0
        %v690 = vsub.f32 %v679, 1.0
        %v691 = vsub.f32 %v681, 1.0
        %v692 = vsub.f32 %v683, 1.0
        %v693 = vsub.f32 %v685, 1.0
        %v694 = vsel %vm654, %v636, %v686
        %v695 = vsel %vm655, %v638, %v687
        %v696 = vsel %vm656, %v640, %v688
        %v697 = vsel %vm657, %v642, %v689
        %v698 = vsel %vm658, %v646, %v690
        %v699 = vsel %vm659, %v648, %v691
        %v700 = vsel %vm660, %v650, %v692
        %v701 = vsel %vm661, %v652, %v693
        %v702 = vpack.c.bf16 %v696, %v694
        %v703 = vpack.c.bf16 %v697, %v695
        %v704 = vpack.c.bf16 %v700, %v698
        %v705 = vpack.c.bf16 %v701, %v699
        %710 = vrot.lane.b32.xlu0 %v702, 127
        %v711 = vpop.permute.xlu0 %710
        %712 = vrot.lane.b32.xlu0 %v703, 127
        %v713 = vpop.permute.xlu0 %712
        %714 = vrot.lane.b32.xlu0 %v704, 127
        %v715 = vpop.permute.xlu0 %714
        %716 = vrot.lane.b32.xlu0 %v705, 127
        %v717 = vpop.permute.xlu0 %716
        %v718 = vsel %vm374, %v711, %v713
        %v719 = vsel %vm374, %v715, %v717
        %722 = vrot.lane.b32.xlu0 %v702, 126
        %v723 = vpop.permute.xlu0 %722
        %724 = vrot.lane.b32.xlu0 %v703, 126
        %v725 = vpop.permute.xlu0 %724
        %726 = vrot.lane.b32.xlu0 %v704, 126
        %v727 = vpop.permute.xlu0 %726
        %728 = vrot.lane.b32.xlu0 %v705, 126
        %v729 = vpop.permute.xlu0 %728
        %vm730 = vcmask 1031168
        %v731 = vsel %vm730, %v723, %v725
        %v732 = vsel %vm730, %v727, %v729
        %v735 = vld [vmem:[%s5] sm:$0xf]
        %v736 = vld [vmem:[%s5 + $0x4] sm:$0xf]
        %v737 = vld [vmem:[%s5 + $0x8] sm:$0xf]
        %v738 = vld [vmem:[%s5 + $0xc] sm:$0xf]
        %v739 = vld [vmem:[%s6] sm:$0xff]
        %v740 = vld [vmem:[%s6 + $0x8] sm:$0xff]
        %v741 = vld [vmem:[%s6 + $0x10] sm:$0xff]
        %v742 = vld [vmem:[%s6 + $0x18] sm:$0xff]
        %744 = vset.pattern.permute.xlu0 0
        %745 = vperm.xlu0 %744, %v739
        %v746 = vpop.permute.xlu0 %745
        %749 = vset.pattern.permute.xlu0 0
        %750 = vperm.xlu0 %749, %v740
        %v751 = vpop.permute.xlu0 %750
        %754 = vset.pattern.permute.xlu0 0
        %755 = vperm.xlu0 %754, %v741
        %v756 = vpop.permute.xlu0 %755
        %759 = vset.pattern.permute.xlu0 0
        %760 = vperm.xlu0 %759, %v742
        %v761 = vpop.permute.xlu0 %760
        %v767 = vunpack.c.l.b16 %v735
        %v768 = vunpack.c.l.b16 %v736
        %v769 = vunpack.c.l.b16 %v737
        %v770 = vunpack.c.l.b16 %v738
        %v771 = vpack.c.b16 %v768, %v767
        %v772 = vpack.c.b16 %v770, %v769
        %vm773 = vcmask 785408
        %v775 = vsel %vm773, %v771, 0
        %v778 = vsel %vm773, %v772, 0
        %780 = vmatprep.subr.bf16.mxu0 0
        %781 = vmatpush1.bf16.msra.mxu0 0
        %782 = vmatprep.subr.bf16.mxu0 0
        %783 = vmatpush1.bf16.msra.mxu0 0
        %784 = vmatprep.subr.bf16.mxu0 0
        %785 = vmatpush1.bf16.msra.mxu0 %v732
        %786 = vmatprep.subr.bf16.mxu0 0
        %787 = vmatpush1.bf16.msra.mxu0 %v731
        %788 = vmatprep.subr.bf16.mxu0 0
        %789 = vmatpush1.bf16.msra.mxu0 %v719
        %790 = vmatprep.subr.bf16.mxu0 0
        %791 = vmatpush1.bf16.msra.mxu0 %v718
        %792 = vmatprep.subr.bf16.mxu0 0
        %793 = vmatpush1.bf16.msra.mxu0 %v704
        %794 = vmatprep.subr.bf16.mxu0 0
        %795 = vmatpush1.bf16.msra.mxu0 %v702
        %796 = vmatprep.subr.bf16.mxu0 0
        %797 = vmatpush2.bf16.msra.mxu0 0
        %798 = vmatprep.subr.bf16.mxu0 0
        %799 = vmatpush2.bf16.msra.mxu0 0
        %800 = vmatprep.subr.bf16.mxu0 0
        %801 = vmatpush2.bf16.msra.mxu0 0
        %802 = vmatprep.subr.bf16.mxu0 0
        %803 = vmatpush2.bf16.msra.mxu0 0
        %804 = vmatprep.subr.bf16.mxu0 0
        %805 = vmatpush2.bf16.msra.mxu0 0
        %806 = vmatprep.subr.bf16.mxu0 0
        %807 = vmatpush2.bf16.msra.mxu0 0
        %808 = vmatprep.subr.bf16.mxu0 0
        %809 = vmatpush2.bf16.msra.mxu0 0
        %810 = vmatprep.subr.bf16.mxu0 0
        %811 = vmatpush2.bf16.msra.mxu0 0
        %812 = vmatprep.mubr.bf16.mxu0 0
        %813 = vmatmul.mubr.bf16.gmra.mxu0 %v775
        %v814 = vpop.f32.mrf.mxu0
        %v815 = vadd.f32 %v746, %v814
        %v816 = vpop.f32.mrf.mxu0
        %v817 = vpop.f32.mrf.mxu0
        %v818 = vadd.f32 %v751, %v817
        %v819 = vpop.f32.mrf.mxu0
        %820 = vmatprep.mubr.bf16.mxu0 0
        %821 = vmatmul.mubr.bf16.gmra.mxu0 %v778
        %v822 = vpop.f32.mrf.mxu0
        %v823 = vadd.f32 %v756, %v822
        %v824 = vpop.f32.mrf.mxu0
        %v825 = vpop.f32.mrf.mxu0
        %v826 = vadd.f32 %v761, %v825
        %v827 = vpop.f32.mrf.mxu0
        %828 = vdwg.mxu0
        %v829 = vld [vmem:[%s7] sm:$0xff]
        %v830 = vld [vmem:[%s7 + $0x8] sm:$0xff]
        %v831 = vld [vmem:[%s7 + $0x10] sm:$0xff]
        %v832 = vld [vmem:[%s7 + $0x18] sm:$0xff]
        %v833 = vld [vmem:[%s7 + $0x20] sm:$0xff]
        %v834 = vld [vmem:[%s7 + $0x28] sm:$0xff]
        %v835 = vld [vmem:[%s7 + $0x30] sm:$0xff]
        %v836 = vld [vmem:[%s7 + $0x38] sm:$0xff]
        %vm837 = vcmask 261120
        %v839 = vsel %vm837, %v829, 0
        %v842 = vsel %vm837, %v830, 0
        %v845 = vsel %vm837, %v831, 0
        %v848 = vsel %vm837, %v832, 0
        %v851 = vsel %vm837, %v833, 0
        %v854 = vsel %vm837, %v834, 0
        %v857 = vsel %vm837, %v835, 0
        %v860 = vsel %vm837, %v836, 0
        %862 = vmatprep.subr.mxu0 0.0
        %863 = vmatpush1.msra.mxu0 0.0
        %864 = vmatprep.subr.mxu0 0.0
        %865 = vmatpush1.msra.mxu0 0.0
        %866 = vmatprep.subr.mxu0 0.0
        %867 = vmatpush1.msra.mxu0 0.0
        %868 = vmatprep.subr.mxu0 0.0
        %869 = vmatpush1.msra.mxu0 0.0
        %870 = vmatprep.subr.mxu0 0.0
        %871 = vmatpush1.msra.mxu0 0.0
        %872 = vmatprep.subr.mxu0 0.0
        %873 = vmatpush1.msra.mxu0 0.0
        %874 = vmatprep.subr.mxu0 0.0
        %875 = vmatpush1.msra.mxu0 0.0
        %876 = vmatprep.subr.mxu0 0.0
        %877 = vmatpush1.msra.mxu0 0.0
        %878 = vmatprep.subr.mxu0 0.0
        %879 = vmatpush1.msra.mxu0 0.0
        %880 = vmatprep.subr.mxu0 0.0
        %881 = vmatpush1.msra.mxu0 0.0
        %882 = vmatprep.subr.mxu0 0.0
        %883 = vmatpush1.msra.mxu0 0.0
        %884 = vmatprep.subr.mxu0 0.0
        %885 = vmatpush1.msra.mxu0 0.0
        %886 = vmatprep.subr.mxu0 0.0
        %887 = vmatpush1.msra.mxu0 %v826
        %888 = vmatprep.subr.mxu0 0.0
        %889 = vmatpush1.msra.mxu0 %v823
        %890 = vmatprep.subr.mxu0 0.0
        %891 = vmatpush1.msra.mxu0 %v818
        %892 = vmatprep.subr.mxu0 0.0
        %893 = vmatpush1.msra.mxu0 %v815
        %894 = vmatprep.subr.mxu0 0.0
        %895 = vmatpush2.msra.mxu0 0.0
        %896 = vmatprep.subr.mxu0 0.0
        %897 = vmatpush2.msra.mxu0 0.0
        %898 = vmatprep.subr.mxu0 0.0
        %899 = vmatpush2.msra.mxu0 0.0
        %900 = vmatprep.subr.mxu0 0.0
        %901 = vmatpush2.msra.mxu0 0.0
        %902 = vmatprep.subr.mxu0 0.0
        %903 = vmatpush2.msra.mxu0 0.0
        %904 = vmatprep.subr.mxu0 0.0
        %905 = vmatpush2.msra.mxu0 0.0
        %906 = vmatprep.subr.mxu0 0.0
        %907 = vmatpush2.msra.mxu0 0.0
        %908 = vmatprep.subr.mxu0 0.0
        %909 = vmatpush2.msra.mxu0 0.0
        %910 = vmatprep.subr.mxu0 0.0
        %911 = vmatpush2.msra.mxu0 0.0
        %912 = vmatprep.subr.mxu0 0.0
        %913 = vmatpush2.msra.mxu0 0.0
        %914 = vmatprep.subr.mxu0 0.0
        %915 = vmatpush2.msra.mxu0 0.0
        %916 = vmatprep.subr.mxu0 0.0
        %917 = vmatpush2.msra.mxu0 0.0
        %918 = vmatprep.subr.mxu0 0.0
        %919 = vmatpush2.msra.mxu0 0.0
        %920 = vmatprep.subr.mxu0 0.0
        %921 = vmatpush2.msra.mxu0 0.0
        %922 = vmatprep.subr.mxu0 0.0
        %923 = vmatpush2.msra.mxu0 0.0
        %924 = vmatprep.subr.mxu0 0.0
        %925 = vmatpush2.msra.mxu0 0.0
        %926 = vmatprep.mubr.f32.mxu0 0.0
        %927 = vmatmul.mubr.f32.gmra.mxu0 %v839
        %v928 = vpop.f32.mrf.mxu0
        %v929 = vadd.f32 0.0, %v928
        %v930 = vpop.f32.mrf.mxu0
        %931 = vmatprep.mubr.f32.mxu0 0.0
        %932 = vmatmul.mubr.f32.gmra.mxu0 %v842
        %v933 = vpop.f32.mrf.mxu0
        %v934 = vadd.f32 0.0, %v933
        %v935 = vpop.f32.mrf.mxu0
        %936 = vmatprep.mubr.f32.mxu0 0.0
        %937 = vmatmul.mubr.f32.gmra.mxu0 %v845
        %v938 = vpop.f32.mrf.mxu0
        %v939 = vadd.f32 0.0, %v938
        %v940 = vpop.f32.mrf.mxu0
        %941 = vmatprep.mubr.f32.mxu0 0.0
        %942 = vmatmul.mubr.f32.gmra.mxu0 %v848
        %v943 = vpop.f32.mrf.mxu0
        %v944 = vadd.f32 0.0, %v943
        %v945 = vpop.f32.mrf.mxu0
        %946 = vmatprep.mubr.f32.mxu0 0.0
        %947 = vmatmul.mubr.f32.gmra.mxu0 %v851
        %v948 = vpop.f32.mrf.mxu0
        %v949 = vadd.f32 0.0, %v948
        %v950 = vpop.f32.mrf.mxu0
        %951 = vmatprep.mubr.f32.mxu0 0.0
        %952 = vmatmul.mubr.f32.gmra.mxu0 %v854
        %v953 = vpop.f32.mrf.mxu0
        %v954 = vadd.f32 0.0, %v953
        %v955 = vpop.f32.mrf.mxu0
        %956 = vmatprep.mubr.f32.mxu0 0.0
        %957 = vmatmul.mubr.f32.gmra.mxu0 %v857
        %v958 = vpop.f32.mrf.mxu0
        %v959 = vadd.f32 0.0, %v958
        %v960 = vpop.f32.mrf.mxu0
        %961 = vmatprep.mubr.f32.mxu0 0.0
        %962 = vmatmul.mubr.f32.gmra.mxu0 %v860
        %v963 = vpop.f32.mrf.mxu0
        %v964 = vadd.f32 0.0, %v963
        %v965 = vpop.f32.mrf.mxu0
        %966 = vdwg.mxu0
        %v967 = vld [vmem:[%s8] sm:$0xff]
        %v968 = vld [vmem:[%s8 + $0x8] sm:$0xff]
        %v969 = vld [vmem:[%s8 + $0x10] sm:$0xff]
        %v970 = vld [vmem:[%s8 + $0x18] sm:$0xff]
        %v971 = vld [vmem:[%s8 + $0x20] sm:$0xff]
        %v972 = vld [vmem:[%s8 + $0x28] sm:$0xff]
        %v973 = vld [vmem:[%s8 + $0x30] sm:$0xff]
        %v974 = vld [vmem:[%s8 + $0x38] sm:$0xff]
        %v975 = vmul.f32 %v929, 2.0
        %v976 = vmul.f32 %v934, 2.0
        %v977 = vmul.f32 %v939, 2.0
        %v978 = vmul.f32 %v944, 2.0
        %v979 = vmul.f32 %v949, 2.0
        %v980 = vmul.f32 %v954, 2.0
        %v981 = vmul.f32 %v959, 2.0
        %v982 = vmul.f32 %v964, 2.0
        %984 = vset.pattern.permute.xlu0 0
        %985 = vperm.xlu0 %984, %v967
        %v986 = vpop.permute.xlu0 %985
        %989 = vset.pattern.permute.xlu0 0
        %990 = vperm.xlu0 %989, %v968
        %v991 = vpop.permute.xlu0 %990
        %994 = vset.pattern.permute.xlu0 0
        %995 = vperm.xlu0 %994, %v969
        %v996 = vpop.permute.xlu0 %995
        %999 = vset.pattern.permute.xlu0 0
        %1000 = vperm.xlu0 %999, %v970
        %v1001 = vpop.permute.xlu0 %1000
        %1004 = vset.pattern.permute.xlu0 0
        %1005 = vperm.xlu0 %1004, %v971
        %v1006 = vpop.permute.xlu0 %1005
        %1009 = vset.pattern.permute.xlu0 0
        %1010 = vperm.xlu0 %1009, %v972
        %v1011 = vpop.permute.xlu0 %1010
        %1014 = vset.pattern.permute.xlu0 0
        %1015 = vperm.xlu0 %1014, %v973
        %v1016 = vpop.permute.xlu0 %1015
        %1019 = vset.pattern.permute.xlu0 0
        %1020 = vperm.xlu0 %1019, %v974
        %v1021 = vpop.permute.xlu0 %1020
        %v1023 = vsub.f32 %v986, %v975
        %v1024 = vsub.f32 %v991, %v976
        %v1025 = vsub.f32 %v996, %v977
        %v1026 = vsub.f32 %v1001, %v978
        %v1027 = vsub.f32 %v1006, %v979
        %v1028 = vsub.f32 %v1011, %v980
        %v1029 = vsub.f32 %v1016, %v981
        %v1030 = vsub.f32 %v1021, %v982
        %v1031 = vmin.f32 %v1023, %v1027
        %v1032 = vmin.f32 %v1024, %v1028
        %v1033 = vmin.f32 %v1025, %v1029
        %v1034 = vmin.f32 %v1026, %v1030
        %v1035 = vmin.f32 %v1031, %v1032
        %v1036 = vmin.f32 %v1033, %v1034
        %v1037 = vmin.f32 %v1035, %v1036
        %v1038 = vrot.slane %v1037, 4
        %v1039 = vmin.f32 %v1037, %v1038
        %v1040 = vrot.slane %v1039, 2
        %v1041 = vmin.f32 %v1039, %v1040
        %v1042 = vrot.slane %v1041, 1
        %v1043 = vmin.f32 %v1041, %v1042
        %v1044 = vlaneseq
        %v1045 = vshrl.u32 %v1044, 7
        %v1046 = vadd.s32 %v1045, 8
        %v1047 = vadd.s32 %v1045, 16
        %v1048 = vadd.s32 %v1045, 24
        %v1049 = vadd.s32 %v1045, 32
        %v1050 = vadd.s32 %v1045, 40
        %v1051 = vadd.s32 %v1045, 48
        %v1052 = vadd.s32 %v1045, 56
        %vm1053 = vcmp.eq.f32.partialorder %v1023, %v1043
        %vm1054 = vcmp.eq.f32.partialorder %v1024, %v1043
        %vm1055 = vcmp.eq.f32.partialorder %v1025, %v1043
        %vm1056 = vcmp.eq.f32.partialorder %v1026, %v1043
        %vm1057 = vcmp.eq.f32.partialorder %v1027, %v1043
        %vm1058 = vcmp.eq.f32.partialorder %v1028, %v1043
        %vm1059 = vcmp.eq.f32.partialorder %v1029, %v1043
        %vm1060 = vcmp.eq.f32.partialorder %v1030, %v1043
        %v1061 = vsel %vm1053, %v1045, 2147483647
        %v1062 = vsel %vm1054, %v1046, 2147483647
        %v1063 = vsel %vm1055, %v1047, 2147483647
        %v1064 = vsel %vm1056, %v1048, 2147483647
        %v1065 = vsel %vm1057, %v1049, 2147483647
        %v1066 = vsel %vm1058, %v1050, 2147483647
        %v1067 = vsel %vm1059, %v1051, 2147483647
        %v1068 = vsel %vm1060, %v1052, 2147483647
        %vm1069 = vcmp.lt.s32.totalorder %v1061, %v1065
        %v1070 = vsel %vm1069, %v1061, %v1065
        %vm1071 = vcmp.lt.s32.totalorder %v1062, %v1066
        %v1072 = vsel %vm1071, %v1062, %v1066
        %vm1073 = vcmp.lt.s32.totalorder %v1063, %v1067
        %v1074 = vsel %vm1073, %v1063, %v1067
        %vm1075 = vcmp.lt.s32.totalorder %v1064, %v1068
        %v1076 = vsel %vm1075, %v1064, %v1068
        %vm1077 = vcmp.lt.s32.totalorder %v1070, %v1072
        %v1078 = vsel %vm1077, %v1070, %v1072
        %vm1079 = vcmp.lt.s32.totalorder %v1074, %v1076
        %v1080 = vsel %vm1079, %v1074, %v1076
        %vm1081 = vcmp.lt.s32.totalorder %v1078, %v1080
        %v1082 = vsel %vm1081, %v1078, %v1080
        %v1083 = vrot.slane %v1082, 4
        %vm1084 = vcmp.lt.s32.totalorder %v1082, %v1083
        %v1085 = vsel %vm1084, %v1082, %v1083
        %v1086 = vrot.slane %v1085, 2
        %vm1087 = vcmp.lt.s32.totalorder %v1085, %v1086
        %v1088 = vsel %vm1087, %v1085, %v1086
        %v1089 = vrot.slane %v1088, 1
        %vm1090 = vcmp.lt.s32.totalorder %v1088, %v1089
        %v1091 = vsel %vm1090, %v1088, %v1089
        %1092 = vst [vmem:[%s349] sm:$0x1] %v1091
        %vm1093 = vcmp.eq.s32.totalorder %v1045, %v1091
        %vm1094 = vcmp.eq.s32.totalorder %v1046, %v1091
        %vm1095 = vcmp.eq.s32.totalorder %v1047, %v1091
        %vm1096 = vcmp.eq.s32.totalorder %v1048, %v1091
        %vm1097 = vcmp.eq.s32.totalorder %v1049, %v1091
        %vm1098 = vcmp.eq.s32.totalorder %v1050, %v1091
        %vm1099 = vcmp.eq.s32.totalorder %v1051, %v1091
        %vm1100 = vcmp.eq.s32.totalorder %v1052, %v1091
        %v1101 = vsel %vm1093, 1, 0
        %v1102 = vsel %vm1094, 1, 0
        %v1103 = vsel %vm1095, 1, 0
        %v1104 = vsel %vm1096, 1, 0
        %v1105 = vsel %vm1097, 1, 0
        %v1106 = vsel %vm1098, 1, 0
        %v1107 = vsel %vm1099, 1, 0
        %v1108 = vsel %vm1100, 1, 0
        %v1109 = vcvt.s32.f32 %v1101
        %v1110 = vcvt.s32.f32 %v1102
        %v1111 = vcvt.s32.f32 %v1103
        %v1112 = vcvt.s32.f32 %v1104
        %v1113 = vcvt.s32.f32 %v1105
        %v1114 = vcvt.s32.f32 %v1106
        %v1115 = vcvt.s32.f32 %v1107
        %v1116 = vcvt.s32.f32 %v1108
        %1117 = vxpose.xlu0.b32.start [1/16] %v829, 128
        %1118 = vxpose.xlu0.b32.cont [2/16] %v830, 128
        %1119 = vxpose.xlu0.b32.cont [3/16] %v831, 128
        %1120 = vxpose.xlu0.b32.cont [4/16] %v832, 128
        %1121 = vxpose.xlu0.b32.cont [5/16] %v833, 128
        %1122 = vxpose.xlu0.b32.cont [6/16] %v834, 128
        %1123 = vxpose.xlu0.b32.cont [7/16] %v835, 128
        %1124 = vxpose.xlu0.b32.cont [8/16] %v836, 128
        %1125 = vxpose.xlu0.b32.cont [9/16] 0.0, 128
        %1126 = vxpose.xlu0.b32.cont [10/16] 0.0, 128
        %1127 = vxpose.xlu0.b32.cont [11/16] 0.0, 128
        %1128 = vxpose.xlu0.b32.cont [12/16] 0.0, 128
        %1129 = vxpose.xlu0.b32.cont [13/16] 0.0, 128
        %1130 = vxpose.xlu0.b32.cont [14/16] 0.0, 128
        %1131 = vxpose.xlu0.b32.cont [15/16] 0.0, 128
        %1132 = vxpose.xlu0.b32.end [16/16] 0.0, 128
        %v1133 = vpop.trf.xlu0
        %v1134 = vpop.trf.xlu0
        %v1135 = vpop.trf.xlu0
        %v1136 = vpop.trf.xlu0
        %v1137 = vpop.trf.xlu0
        %v1138 = vpop.trf.xlu0
        %v1139 = vpop.trf.xlu0
        %v1140 = vpop.trf.xlu0
        %v1141 = vpop.trf.xlu0
        %v1142 = vpop.trf.xlu0
        %v1143 = vpop.trf.xlu0
        %v1144 = vpop.trf.xlu0
        %v1145 = vpop.trf.xlu0
        %v1146 = vpop.trf.xlu0
        %v1147 = vpop.trf.xlu0
        %v1148 = vpop.trf.xlu0
        %v1150 = vsel %vm594, %v1133, 0
        %v1153 = vsel %vm594, %v1134, 0
        %v1156 = vsel %vm594, %v1135, 0
        %v1159 = vsel %vm594, %v1136, 0
        %1161 = vmatprep.subr.mxu0 0.0
        %1162 = vmatpush1.msra.mxu0 0.0
        %1163 = vmatprep.subr.mxu0 0.0
        %1164 = vmatpush1.msra.mxu0 0.0
        %1165 = vmatprep.subr.mxu0 0.0
        %1166 = vmatpush1.msra.mxu0 0.0
        %1167 = vmatprep.subr.mxu0 0.0
        %1168 = vmatpush1.msra.mxu0 0.0
        %1169 = vmatprep.subr.mxu0 0.0
        %1170 = vmatpush1.msra.mxu0 0.0
        %1171 = vmatprep.subr.mxu0 0.0
        %1172 = vmatpush1.msra.mxu0 0.0
        %1173 = vmatprep.subr.mxu0 0.0
        %1174 = vmatpush1.msra.mxu0 0.0
        %1175 = vmatprep.subr.mxu0 0.0
        %1176 = vmatpush1.msra.mxu0 0.0
        %1177 = vmatprep.subr.mxu0 0.0
        %1178 = vmatpush1.msra.mxu0 %v1116
        %1179 = vmatprep.subr.mxu0 0.0
        %1180 = vmatpush1.msra.mxu0 %v1115
        %1181 = vmatprep.subr.mxu0 0.0
        %1182 = vmatpush1.msra.mxu0 %v1114
        %1183 = vmatprep.subr.mxu0 0.0
        %1184 = vmatpush1.msra.mxu0 %v1113
        %1185 = vmatprep.subr.mxu0 0.0
        %1186 = vmatpush1.msra.mxu0 %v1112
        %1187 = vmatprep.subr.mxu0 0.0
        %1188 = vmatpush1.msra.mxu0 %v1111
        %1189 = vmatprep.subr.mxu0 0.0
        %1190 = vmatpush1.msra.mxu0 %v1110
        %1191 = vmatprep.subr.mxu0 0.0
        %1192 = vmatpush1.msra.mxu0 %v1109
        %1193 = vmatprep.subr.mxu0 0.0
        %1194 = vmatpush2.msra.mxu0 0.0
        %1195 = vmatprep.subr.mxu0 0.0
        %1196 = vmatpush2.msra.mxu0 0.0
        %1197 = vmatprep.subr.mxu0 0.0
        %1198 = vmatpush2.msra.mxu0 0.0
        %1199 = vmatprep.subr.mxu0 0.0
        %1200 = vmatpush2.msra.mxu0 0.0
        %1201 = vmatprep.subr.mxu0 0.0
        %1202 = vmatpush2.msra.mxu0 0.0
        %1203 = vmatprep.subr.mxu0 0.0
        %1204 = vmatpush2.msra.mxu0 0.0
        %1205 = vmatprep.subr.mxu0 0.0
        %1206 = vmatpush2.msra.mxu0 0.0
        %1207 = vmatprep.subr.mxu0 0.0
        %1208 = vmatpush2.msra.mxu0 0.0
        %1209 = vmatprep.subr.mxu0 0.0
        %1210 = vmatpush2.msra.mxu0 0.0
        %1211 = vmatprep.subr.mxu0 0.0
        %1212 = vmatpush2.msra.mxu0 0.0
        %1213 = vmatprep.subr.mxu0 0.0
        %1214 = vmatpush2.msra.mxu0 0.0
        %1215 = vmatprep.subr.mxu0 0.0
        %1216 = vmatpush2.msra.mxu0 0.0
        %1217 = vmatprep.subr.mxu0 0.0
        %1218 = vmatpush2.msra.mxu0 0.0
        %1219 = vmatprep.subr.mxu0 0.0
        %1220 = vmatpush2.msra.mxu0 0.0
        %1221 = vmatprep.subr.mxu0 0.0
        %1222 = vmatpush2.msra.mxu0 0.0
        %1223 = vmatprep.subr.mxu0 0.0
        %1224 = vmatpush2.msra.mxu0 0.0
        %1225 = vmatprep.mubr.f32.mxu0 0.0
        %1226 = vmatmul.mubr.f32.gmra.mxu0 %v1150
        %v1227 = vpop.f32.mrf.mxu0
        %v1228 = vadd.f32 0.0, %v1227
        %v1229 = vpop.f32.mrf.mxu0
        %1230 = vmatprep.mubr.f32.mxu0 0.0
        %1231 = vmatmul.mubr.f32.gmra.mxu0 %v1153
        %v1232 = vpop.f32.mrf.mxu0
        %v1233 = vadd.f32 0.0, %v1232
        %v1234 = vpop.f32.mrf.mxu0
        %1235 = vmatprep.mubr.f32.mxu0 0.0
        %1236 = vmatmul.mubr.f32.gmra.mxu0 %v1156
        %v1237 = vpop.f32.mrf.mxu0
        %v1238 = vadd.f32 0.0, %v1237
        %v1239 = vpop.f32.mrf.mxu0
        %1240 = vmatprep.mubr.f32.mxu0 0.0
        %1241 = vmatmul.mubr.f32.gmra.mxu0 %v1159
        %v1242 = vpop.f32.mrf.mxu0
        %v1243 = vadd.f32 0.0, %v1242
        %v1244 = vpop.f32.mrf.mxu0
        %1245 = vdwg.mxu0
        %v1246 = vsub.f32 %v815, %v1228
        %v1247 = vsub.f32 %v818, %v1233
        %v1248 = vsub.f32 %v823, %v1238
        %v1249 = vsub.f32 %v826, %v1243
        %s1250 = scalar_lea.vmem %s7, 64
        %v1251 = vld [vmem:[%s1250] sm:$0xff]
        %v1252 = vld [vmem:[%s1250 + $0x8] sm:$0xff]
        %v1253 = vld [vmem:[%s1250 + $0x10] sm:$0xff]
        %v1254 = vld [vmem:[%s1250 + $0x18] sm:$0xff]
        %v1255 = vld [vmem:[%s1250 + $0x20] sm:$0xff]
        %v1256 = vld [vmem:[%s1250 + $0x28] sm:$0xff]
        %v1257 = vld [vmem:[%s1250 + $0x30] sm:$0xff]
        %v1258 = vld [vmem:[%s1250 + $0x38] sm:$0xff]
        %v1260 = vsel %vm837, %v1251, 0
        %v1263 = vsel %vm837, %v1252, 0
        %v1266 = vsel %vm837, %v1253, 0
        %v1269 = vsel %vm837, %v1254, 0
        %v1272 = vsel %vm837, %v1255, 0
        %v1275 = vsel %vm837, %v1256, 0
        %v1278 = vsel %vm837, %v1257, 0
        %v1281 = vsel %vm837, %v1258, 0
        %1283 = vmatprep.subr.mxu0 0.0
        %1284 = vmatpush1.msra.mxu0 0.0
        %1285 = vmatprep.subr.mxu0 0.0
        %1286 = vmatpush1.msra.mxu0 0.0
        %1287 = vmatprep.subr.mxu0 0.0
        %1288 = vmatpush1.msra.mxu0 0.0
        %1289 = vmatprep.subr.mxu0 0.0
        %1290 = vmatpush1.msra.mxu0 0.0
        %1291 = vmatprep.subr.mxu0 0.0
        %1292 = vmatpush1.msra.mxu0 0.0
        %1293 = vmatprep.subr.mxu0 0.0
        %1294 = vmatpush1.msra.mxu0 0.0
        %1295 = vmatprep.subr.mxu0 0.0
        %1296 = vmatpush1.msra.mxu0 0.0
        %1297 = vmatprep.subr.mxu0 0.0
        %1298 = vmatpush1.msra.mxu0 0.0
        %1299 = vmatprep.subr.mxu0 0.0
        %1300 = vmatpush1.msra.mxu0 0.0
        %1301 = vmatprep.subr.mxu0 0.0
        %1302 = vmatpush1.msra.mxu0 0.0
        %1303 = vmatprep.subr.mxu0 0.0
        %1304 = vmatpush1.msra.mxu0 0.0
        %1305 = vmatprep.subr.mxu0 0.0
        %1306 = vmatpush1.msra.mxu0 0.0
        %1307 = vmatprep.subr.mxu0 0.0
        %1308 = vmatpush1.msra.mxu0 %v1249
        %1309 = vmatprep.subr.mxu0 0.0
        %1310 = vmatpush1.msra.mxu0 %v1248
        %1311 = vmatprep.subr.mxu0 0.0
        %1312 = vmatpush1.msra.mxu0 %v1247
        %1313 = vmatprep.subr.mxu0 0.0
        %1314 = vmatpush1.msra.mxu0 %v1246
        %1315 = vmatprep.subr.mxu0 0.0
        %1316 = vmatpush2.msra.mxu0 0.0
        %1317 = vmatprep.subr.mxu0 0.0
        %1318 = vmatpush2.msra.mxu0 0.0
        %1319 = vmatprep.subr.mxu0 0.0
        %1320 = vmatpush2.msra.mxu0 0.0
        %1321 = vmatprep.subr.mxu0 0.0
        %1322 = vmatpush2.msra.mxu0 0.0
        %1323 = vmatprep.subr.mxu0 0.0
        %1324 = vmatpush2.msra.mxu0 0.0
        %1325 = vmatprep.subr.mxu0 0.0
        %1326 = vmatpush2.msra.mxu0 0.0
        %1327 = vmatprep.subr.mxu0 0.0
        %1328 = vmatpush2.msra.mxu0 0.0
        %1329 = vmatprep.subr.mxu0 0.0
        %1330 = vmatpush2.msra.mxu0 0.0
        %1331 = vmatprep.subr.mxu0 0.0
        %1332 = vmatpush2.msra.mxu0 0.0
        %1333 = vmatprep.subr.mxu0 0.0
        %1334 = vmatpush2.msra.mxu0 0.0
        %1335 = vmatprep.subr.mxu0 0.0
        %1336 = vmatpush2.msra.mxu0 0.0
        %1337 = vmatprep.subr.mxu0 0.0
        %1338 = vmatpush2.msra.mxu0 0.0
        %1339 = vmatprep.subr.mxu0 0.0
        %1340 = vmatpush2.msra.mxu0 0.0
        %1341 = vmatprep.subr.mxu0 0.0
        %1342 = vmatpush2.msra.mxu0 0.0
        %1343 = vmatprep.subr.mxu0 0.0
        %1344 = vmatpush2.msra.mxu0 0.0
        %1345 = vmatprep.subr.mxu0 0.0
        %1346 = vmatpush2.msra.mxu0 0.0
        %1347 = vmatprep.mubr.f32.mxu0 0.0
        %1348 = vmatmul.mubr.f32.gmra.mxu0 %v1260
        %v1349 = vpop.f32.mrf.mxu0
        %v1350 = vadd.f32 0.0, %v1349
        %v1351 = vpop.f32.mrf.mxu0
        %1352 = vmatprep.mubr.f32.mxu0 0.0
        %1353 = vmatmul.mubr.f32.gmra.mxu0 %v1263
        %v1354 = vpop.f32.mrf.mxu0
        %v1355 = vadd.f32 0.0, %v1354
        %v1356 = vpop.f32.mrf.mxu0
        %1357 = vmatprep.mubr.f32.mxu0 0.0
        %1358 = vmatmul.mubr.f32.gmra.mxu0 %v1266
        %v1359 = vpop.f32.mrf.mxu0
        %v1360 = vadd.f32 0.0, %v1359
        %v1361 = vpop.f32.mrf.mxu0
        %1362 = vmatprep.mubr.f32.mxu0 0.0
        %1363 = vmatmul.mubr.f32.gmra.mxu0 %v1269
        %v1364 = vpop.f32.mrf.mxu0
        %v1365 = vadd.f32 0.0, %v1364
        %v1366 = vpop.f32.mrf.mxu0
        %1367 = vmatprep.mubr.f32.mxu0 0.0
        %1368 = vmatmul.mubr.f32.gmra.mxu0 %v1272
        %v1369 = vpop.f32.mrf.mxu0
        %v1370 = vadd.f32 0.0, %v1369
        %v1371 = vpop.f32.mrf.mxu0
        %1372 = vmatprep.mubr.f32.mxu0 0.0
        %1373 = vmatmul.mubr.f32.gmra.mxu0 %v1275
        %v1374 = vpop.f32.mrf.mxu0
        %v1375 = vadd.f32 0.0, %v1374
        %v1376 = vpop.f32.mrf.mxu0
        %1377 = vmatprep.mubr.f32.mxu0 0.0
        %1378 = vmatmul.mubr.f32.gmra.mxu0 %v1278
        %v1379 = vpop.f32.mrf.mxu0
        %v1380 = vadd.f32 0.0, %v1379
        %v1381 = vpop.f32.mrf.mxu0
        %1382 = vmatprep.mubr.f32.mxu0 0.0
        %1383 = vmatmul.mubr.f32.gmra.mxu0 %v1281
        %v1384 = vpop.f32.mrf.mxu0
        %v1385 = vadd.f32 0.0, %v1384
        %v1386 = vpop.f32.mrf.mxu0
        %1387 = vdwg.mxu0
        %s1388 = scalar_lea.vmem %s8, 64
        %v1389 = vld [vmem:[%s1388] sm:$0xff]
        %v1390 = vld [vmem:[%s1388 + $0x8] sm:$0xff]
        %v1391 = vld [vmem:[%s1388 + $0x10] sm:$0xff]
        %v1392 = vld [vmem:[%s1388 + $0x18] sm:$0xff]
        %v1393 = vld [vmem:[%s1388 + $0x20] sm:$0xff]
        %v1394 = vld [vmem:[%s1388 + $0x28] sm:$0xff]
        %v1395 = vld [vmem:[%s1388 + $0x30] sm:$0xff]
        %v1396 = vld [vmem:[%s1388 + $0x38] sm:$0xff]
        %v1397 = vmul.f32 %v1350, 2.0
        %v1398 = vmul.f32 %v1355, 2.0
        %v1399 = vmul.f32 %v1360, 2.0
        %v1400 = vmul.f32 %v1365, 2.0
        %v1401 = vmul.f32 %v1370, 2.0
        %v1402 = vmul.f32 %v1375, 2.0
        %v1403 = vmul.f32 %v1380, 2.0
        %v1404 = vmul.f32 %v1385, 2.0
        %1406 = vset.pattern.permute.xlu0 0
        %1407 = vperm.xlu0 %1406, %v1389
        %v1408 = vpop.permute.xlu0 %1407
        %1411 = vset.pattern.permute.xlu0 0
        %1412 = vperm.xlu0 %1411, %v1390
        %v1413 = vpop.permute.xlu0 %1412
        %1416 = vset.pattern.permute.xlu0 0
        %1417 = vperm.xlu0 %1416, %v1391
        %v1418 = vpop.permute.xlu0 %1417
        %1421 = vset.pattern.permute.xlu0 0
        %1422 = vperm.xlu0 %1421, %v1392
        %v1423 = vpop.permute.xlu0 %1422
        %1426 = vset.pattern.permute.xlu0 0
        %1427 = vperm.xlu0 %1426, %v1393
        %v1428 = vpop.permute.xlu0 %1427
        %1431 = vset.pattern.permute.xlu0 0
        %1432 = vperm.xlu0 %1431, %v1394
        %v1433 = vpop.permute.xlu0 %1432
        %1436 = vset.pattern.permute.xlu0 0
        %1437 = vperm.xlu0 %1436, %v1395
        %v1438 = vpop.permute.xlu0 %1437
        %1441 = vset.pattern.permute.xlu0 0
        %1442 = vperm.xlu0 %1441, %v1396
        %v1443 = vpop.permute.xlu0 %1442
        %v1445 = vsub.f32 %v1408, %v1397
        %v1446 = vsub.f32 %v1413, %v1398
        %v1447 = vsub.f32 %v1418, %v1399
        %v1448 = vsub.f32 %v1423, %v1400
        %v1449 = vsub.f32 %v1428, %v1401
        %v1450 = vsub.f32 %v1433, %v1402
        %v1451 = vsub.f32 %v1438, %v1403
        %v1452 = vsub.f32 %v1443, %v1404
        %v1453 = vmin.f32 %v1445, %v1449
        %v1454 = vmin.f32 %v1446, %v1450
        %v1455 = vmin.f32 %v1447, %v1451
        %v1456 = vmin.f32 %v1448, %v1452
        %v1457 = vmin.f32 %v1453, %v1454
        %v1458 = vmin.f32 %v1455, %v1456
        %v1459 = vmin.f32 %v1457, %v1458
        %v1460 = vrot.slane %v1459, 4
        %v1461 = vmin.f32 %v1459, %v1460
        %v1462 = vrot.slane %v1461, 2
        %v1463 = vmin.f32 %v1461, %v1462
        %v1464 = vrot.slane %v1463, 1
        %v1465 = vmin.f32 %v1463, %v1464
        %vm1466 = vcmp.eq.f32.partialorder %v1445, %v1465
        %vm1467 = vcmp.eq.f32.partialorder %v1446, %v1465
        %vm1468 = vcmp.eq.f32.partialorder %v1447, %v1465
        %vm1469 = vcmp.eq.f32.partialorder %v1448, %v1465
        %vm1470 = vcmp.eq.f32.partialorder %v1449, %v1465
        %vm1471 = vcmp.eq.f32.partialorder %v1450, %v1465
        %vm1472 = vcmp.eq.f32.partialorder %v1451, %v1465
        %vm1473 = vcmp.eq.f32.partialorder %v1452, %v1465
        %v1474 = vsel %vm1466, %v1045, 2147483647
        %v1475 = vsel %vm1467, %v1046, 2147483647
        %v1476 = vsel %vm1468, %v1047, 2147483647
        %v1477 = vsel %vm1469, %v1048, 2147483647
        %v1478 = vsel %vm1470, %v1049, 2147483647
        %v1479 = vsel %vm1471, %v1050, 2147483647
        %v1480 = vsel %vm1472, %v1051, 2147483647
        %v1481 = vsel %vm1473, %v1052, 2147483647
        %vm1482 = vcmp.lt.s32.totalorder %v1474, %v1478
        %v1483 = vsel %vm1482, %v1474, %v1478
        %vm1484 = vcmp.lt.s32.totalorder %v1475, %v1479
        %v1485 = vsel %vm1484, %v1475, %v1479
        %vm1486 = vcmp.lt.s32.totalorder %v1476, %v1480
        %v1487 = vsel %vm1486, %v1476, %v1480
        %vm1488 = vcmp.lt.s32.totalorder %v1477, %v1481
        %v1489 = vsel %vm1488, %v1477, %v1481
        %vm1490 = vcmp.lt.s32.totalorder %v1483, %v1485
        %v1491 = vsel %vm1490, %v1483, %v1485
        %vm1492 = vcmp.lt.s32.totalorder %v1487, %v1489
        %v1493 = vsel %vm1492, %v1487, %v1489
        %vm1494 = vcmp.lt.s32.totalorder %v1491, %v1493
        %v1495 = vsel %vm1494, %v1491, %v1493
        %v1496 = vrot.slane %v1495, 4
        %vm1497 = vcmp.lt.s32.totalorder %v1495, %v1496
        %v1498 = vsel %vm1497, %v1495, %v1496
        %v1499 = vrot.slane %v1498, 2
        %vm1500 = vcmp.lt.s32.totalorder %v1498, %v1499
        %v1501 = vsel %vm1500, %v1498, %v1499
        %v1502 = vrot.slane %v1501, 1
        %vm1503 = vcmp.lt.s32.totalorder %v1501, %v1502
        %v1504 = vsel %vm1503, %v1501, %v1502
        %1505 = vst [vmem:[%s349 + $0x1] sm:$0x1] %v1504
        %vm1506 = vcmp.eq.s32.totalorder %v1045, %v1504
        %vm1507 = vcmp.eq.s32.totalorder %v1046, %v1504
        %vm1508 = vcmp.eq.s32.totalorder %v1047, %v1504
        %vm1509 = vcmp.eq.s32.totalorder %v1048, %v1504
        %vm1510 = vcmp.eq.s32.totalorder %v1049, %v1504
        %vm1511 = vcmp.eq.s32.totalorder %v1050, %v1504
        %vm1512 = vcmp.eq.s32.totalorder %v1051, %v1504
        %vm1513 = vcmp.eq.s32.totalorder %v1052, %v1504
        %v1514 = vsel %vm1506, 1, 0
        %v1515 = vsel %vm1507, 1, 0
        %v1516 = vsel %vm1508, 1, 0
        %v1517 = vsel %vm1509, 1, 0
        %v1518 = vsel %vm1510, 1, 0
        %v1519 = vsel %vm1511, 1, 0
        %v1520 = vsel %vm1512, 1, 0
        %v1521 = vsel %vm1513, 1, 0
        %v1522 = vcvt.s32.f32 %v1514
        %v1523 = vcvt.s32.f32 %v1515
        %v1524 = vcvt.s32.f32 %v1516
        %v1525 = vcvt.s32.f32 %v1517
        %v1526 = vcvt.s32.f32 %v1518
        %v1527 = vcvt.s32.f32 %v1519
        %v1528 = vcvt.s32.f32 %v1520
        %v1529 = vcvt.s32.f32 %v1521
        %1530 = vxpose.xlu0.b32.start [1/16] %v1251, 128
        %1531 = vxpose.xlu0.b32.cont [2/16] %v1252, 128
        %1532 = vxpose.xlu0.b32.cont [3/16] %v1253, 128
        %1533 = vxpose.xlu0.b32.cont [4/16] %v1254, 128
        %1534 = vxpose.xlu0.b32.cont [5/16] %v1255, 128
        %1535 = vxpose.xlu0.b32.cont [6/16] %v1256, 128
        %1536 = vxpose.xlu0.b32.cont [7/16] %v1257, 128
        %1537 = vxpose.xlu0.b32.cont [8/16] %v1258, 128
        %1538 = vxpose.xlu0.b32.cont [9/16] 0.0, 128
        %1539 = vxpose.xlu0.b32.cont [10/16] 0.0, 128
        %1540 = vxpose.xlu0.b32.cont [11/16] 0.0, 128
        %1541 = vxpose.xlu0.b32.cont [12/16] 0.0, 128
        %1542 = vxpose.xlu0.b32.cont [13/16] 0.0, 128
        %1543 = vxpose.xlu0.b32.cont [14/16] 0.0, 128
        %1544 = vxpose.xlu0.b32.cont [15/16] 0.0, 128
        %1545 = vxpose.xlu0.b32.end [16/16] 0.0, 128
        %v1546 = vpop.trf.xlu0
        %v1547 = vpop.trf.xlu0
        %v1548 = vpop.trf.xlu0
        %v1549 = vpop.trf.xlu0
        %v1550 = vpop.trf.xlu0
        %v1551 = vpop.trf.xlu0
        %v1552 = vpop.trf.xlu0
        %v1553 = vpop.trf.xlu0
        %v1554 = vpop.trf.xlu0
        %v1555 = vpop.trf.xlu0
        %v1556 = vpop.trf.xlu0
        %v1557 = vpop.trf.xlu0
        %v1558 = vpop.trf.xlu0
        %v1559 = vpop.trf.xlu0
        %v1560 = vpop.trf.xlu0
        %v1561 = vpop.trf.xlu0
        %v1563 = vsel %vm594, %v1546, 0
        %v1566 = vsel %vm594, %v1547, 0
        %v1569 = vsel %vm594, %v1548, 0
        %v1572 = vsel %vm594, %v1549, 0
        %1574 = vmatprep.subr.mxu0 0.0
        %1575 = vmatpush1.msra.mxu0 0.0
        %1576 = vmatprep.subr.mxu0 0.0
        %1577 = vmatpush1.msra.mxu0 0.0
        %1578 = vmatprep.subr.mxu0 0.0
        %1579 = vmatpush1.msra.mxu0 0.0
        %1580 = vmatprep.subr.mxu0 0.0
        %1581 = vmatpush1.msra.mxu0 0.0
        %1582 = vmatprep.subr.mxu0 0.0
        %1583 = vmatpush1.msra.mxu0 0.0
        %1584 = vmatprep.subr.mxu0 0.0
        %1585 = vmatpush1.msra.mxu0 0.0
        %1586 = vmatprep.subr.mxu0 0.0
        %1587 = vmatpush1.msra.mxu0 0.0
        %1588 = vmatprep.subr.mxu0 0.0
        %1589 = vmatpush1.msra.mxu0 0.0
        %1590 = vmatprep.subr.mxu0 0.0
        %1591 = vmatpush1.msra.mxu0 %v1529
        %1592 = vmatprep.subr.mxu0 0.0
        %1593 = vmatpush1.msra.mxu0 %v1528
        %1594 = vmatprep.subr.mxu0 0.0
        %1595 = vmatpush1.msra.mxu0 %v1527
        %1596 = vmatprep.subr.mxu0 0.0
        %1597 = vmatpush1.msra.mxu0 %v1526
        %1598 = vmatprep.subr.mxu0 0.0
        %1599 = vmatpush1.msra.mxu0 %v1525
        %1600 = vmatprep.subr.mxu0 0.0
        %1601 = vmatpush1.msra.mxu0 %v1524
        %1602 = vmatprep.subr.mxu0 0.0
        %1603 = vmatpush1.msra.mxu0 %v1523
        %1604 = vmatprep.subr.mxu0 0.0
        %1605 = vmatpush1.msra.mxu0 %v1522
        %1606 = vmatprep.subr.mxu0 0.0
        %1607 = vmatpush2.msra.mxu0 0.0
        %1608 = vmatprep.subr.mxu0 0.0
        %1609 = vmatpush2.msra.mxu0 0.0
        %1610 = vmatprep.subr.mxu0 0.0
        %1611 = vmatpush2.msra.mxu0 0.0
        %1612 = vmatprep.subr.mxu0 0.0
        %1613 = vmatpush2.msra.mxu0 0.0
        %1614 = vmatprep.subr.mxu0 0.0
        %1615 = vmatpush2.msra.mxu0 0.0
        %1616 = vmatprep.subr.mxu0 0.0
        %1617 = vmatpush2.msra.mxu0 0.0
        %1618 = vmatprep.subr.mxu0 0.0
        %1619 = vmatpush2.msra.mxu0 0.0
        %1620 = vmatprep.subr.mxu0 0.0
        %1621 = vmatpush2.msra.mxu0 0.0
        %1622 = vmatprep.subr.mxu0 0.0
        %1623 = vmatpush2.msra.mxu0 0.0
        %1624 = vmatprep.subr.mxu0 0.0
        %1625 = vmatpush2.msra.mxu0 0.0
        %1626 = vmatprep.subr.mxu0 0.0
        %1627 = vmatpush2.msra.mxu0 0.0
        %1628 = vmatprep.subr.mxu0 0.0
        %1629 = vmatpush2.msra.mxu0 0.0
        %1630 = vmatprep.subr.mxu0 0.0
        %1631 = vmatpush2.msra.mxu0 0.0
        %1632 = vmatprep.subr.mxu0 0.0
        %1633 = vmatpush2.msra.mxu0 0.0
        %1634 = vmatprep.subr.mxu0 0.0
        %1635 = vmatpush2.msra.mxu0 0.0
        %1636 = vmatprep.subr.mxu0 0.0
        %1637 = vmatpush2.msra.mxu0 0.0
        %1638 = vmatprep.mubr.f32.mxu0 0.0
        %1639 = vmatmul.mubr.f32.gmra.mxu0 %v1563
        %v1640 = vpop.f32.mrf.mxu0
        %v1641 = vadd.f32 0.0, %v1640
        %v1642 = vpop.f32.mrf.mxu0
        %1643 = vmatprep.mubr.f32.mxu0 0.0
        %1644 = vmatmul.mubr.f32.gmra.mxu0 %v1566
        %v1645 = vpop.f32.mrf.mxu0
        %v1646 = vadd.f32 0.0, %v1645
        %v1647 = vpop.f32.mrf.mxu0
        %1648 = vmatprep.mubr.f32.mxu0 0.0
        %1649 = vmatmul.mubr.f32.gmra.mxu0 %v1569
        %v1650 = vpop.f32.mrf.mxu0
        %v1651 = vadd.f32 0.0, %v1650
        %v1652 = vpop.f32.mrf.mxu0
        %1653 = vmatprep.mubr.f32.mxu0 0.0
        %1654 = vmatmul.mubr.f32.gmra.mxu0 %v1572
        %v1655 = vpop.f32.mrf.mxu0
        %v1656 = vadd.f32 0.0, %v1655
        %v1657 = vpop.f32.mrf.mxu0
        %1658 = vdwg.mxu0
        %v1659 = vsub.f32 %v1246, %v1641
        %v1660 = vsub.f32 %v1247, %v1646
        %v1661 = vsub.f32 %v1248, %v1651
        %v1662 = vsub.f32 %v1249, %v1656
        %s1663 = scalar_lea.vmem %s7, 128
        %v1664 = vld [vmem:[%s1663] sm:$0xff]
        %v1665 = vld [vmem:[%s1663 + $0x8] sm:$0xff]
        %v1666 = vld [vmem:[%s1663 + $0x10] sm:$0xff]
        %v1667 = vld [vmem:[%s1663 + $0x18] sm:$0xff]
        %v1668 = vld [vmem:[%s1663 + $0x20] sm:$0xff]
        %v1669 = vld [vmem:[%s1663 + $0x28] sm:$0xff]
        %v1670 = vld [vmem:[%s1663 + $0x30] sm:$0xff]
        %v1671 = vld [vmem:[%s1663 + $0x38] sm:$0xff]
        %v1673 = vsel %vm837, %v1664, 0
        %v1676 = vsel %vm837, %v1665, 0
        %v1679 = vsel %vm837, %v1666, 0
        %v1682 = vsel %vm837, %v1667, 0
        %v1685 = vsel %vm837, %v1668, 0
        %v1688 = vsel %vm837, %v1669, 0
        %v1691 = vsel %vm837, %v1670, 0
        %v1694 = vsel %vm837, %v1671, 0
        %1696 = vmatprep.subr.mxu0 0.0
        %1697 = vmatpush1.msra.mxu0 0.0
        %1698 = vmatprep.subr.mxu0 0.0
        %1699 = vmatpush1.msra.mxu0 0.0
        %1700 = vmatprep.subr.mxu0 0.0
        %1701 = vmatpush1.msra.mxu0 0.0
        %1702 = vmatprep.subr.mxu0 0.0
        %1703 = vmatpush1.msra.mxu0 0.0
        %1704 = vmatprep.subr.mxu0 0.0
        %1705 = vmatpush1.msra.mxu0 0.0
        %1706 = vmatprep.subr.mxu0 0.0
        %1707 = vmatpush1.msra.mxu0 0.0
        %1708 = vmatprep.subr.mxu0 0.0
        %1709 = vmatpush1.msra.mxu0 0.0
        %1710 = vmatprep.subr.mxu0 0.0
        %1711 = vmatpush1.msra.mxu0 0.0
        %1712 = vmatprep.subr.mxu0 0.0
        %1713 = vmatpush1.msra.mxu0 0.0
        %1714 = vmatprep.subr.mxu0 0.0
        %1715 = vmatpush1.msra.mxu0 0.0
        %1716 = vmatprep.subr.mxu0 0.0
        %1717 = vmatpush1.msra.mxu0 0.0
        %1718 = vmatprep.subr.mxu0 0.0
        %1719 = vmatpush1.msra.mxu0 0.0
        %1720 = vmatprep.subr.mxu0 0.0
        %1721 = vmatpush1.msra.mxu0 %v1662
        %1722 = vmatprep.subr.mxu0 0.0
        %1723 = vmatpush1.msra.mxu0 %v1661
        %1724 = vmatprep.subr.mxu0 0.0
        %1725 = vmatpush1.msra.mxu0 %v1660
        %1726 = vmatprep.subr.mxu0 0.0
        %1727 = vmatpush1.msra.mxu0 %v1659
        %1728 = vmatprep.subr.mxu0 0.0
        %1729 = vmatpush2.msra.mxu0 0.0
        %1730 = vmatprep.subr.mxu0 0.0
        %1731 = vmatpush2.msra.mxu0 0.0
        %1732 = vmatprep.subr.mxu0 0.0
        %1733 = vmatpush2.msra.mxu0 0.0
        %1734 = vmatprep.subr.mxu0 0.0
        %1735 = vmatpush2.msra.mxu0 0.0
        %1736 = vmatprep.subr.mxu0 0.0
        %1737 = vmatpush2.msra.mxu0 0.0
        %1738 = vmatprep.subr.mxu0 0.0
        %1739 = vmatpush2.msra.mxu0 0.0
        %1740 = vmatprep.subr.mxu0 0.0
        %1741 = vmatpush2.msra.mxu0 0.0
        %1742 = vmatprep.subr.mxu0 0.0
        %1743 = vmatpush2.msra.mxu0 0.0
        %1744 = vmatprep.subr.mxu0 0.0
        %1745 = vmatpush2.msra.mxu0 0.0
        %1746 = vmatprep.subr.mxu0 0.0
        %1747 = vmatpush2.msra.mxu0 0.0
        %1748 = vmatprep.subr.mxu0 0.0
        %1749 = vmatpush2.msra.mxu0 0.0
        %1750 = vmatprep.subr.mxu0 0.0
        %1751 = vmatpush2.msra.mxu0 0.0
        %1752 = vmatprep.subr.mxu0 0.0
        %1753 = vmatpush2.msra.mxu0 0.0
        %1754 = vmatprep.subr.mxu0 0.0
        %1755 = vmatpush2.msra.mxu0 0.0
        %1756 = vmatprep.subr.mxu0 0.0
        %1757 = vmatpush2.msra.mxu0 0.0
        %1758 = vmatprep.subr.mxu0 0.0
        %1759 = vmatpush2.msra.mxu0 0.0
        %1760 = vmatprep.mubr.f32.mxu0 0.0
        %1761 = vmatmul.mubr.f32.gmra.mxu0 %v1673
        %v1762 = vpop.f32.mrf.mxu0
        %v1763 = vadd.f32 0.0, %v1762
        %v1764 = vpop.f32.mrf.mxu0
        %1765 = vmatprep.mubr.f32.mxu0 0.0
        %1766 = vmatmul.mubr.f32.gmra.mxu0 %v1676
        %v1767 = vpop.f32.mrf.mxu0
        %v1768 = vadd.f32 0.0, %v1767
        %v1769 = vpop.f32.mrf.mxu0
        %1770 = vmatprep.mubr.f32.mxu0 0.0
        %1771 = vmatmul.mubr.f32.gmra.mxu0 %v1679
        %v1772 = vpop.f32.mrf.mxu0
        %v1773 = vadd.f32 0.0, %v1772
        %v1774 = vpop.f32.mrf.mxu0
        %1775 = vmatprep.mubr.f32.mxu0 0.0
        %1776 = vmatmul.mubr.f32.gmra.mxu0 %v1682
        %v1777 = vpop.f32.mrf.mxu0
        %v1778 = vadd.f32 0.0, %v1777
        %v1779 = vpop.f32.mrf.mxu0
        %1780 = vmatprep.mubr.f32.mxu0 0.0
        %1781 = vmatmul.mubr.f32.gmra.mxu0 %v1685
        %v1782 = vpop.f32.mrf.mxu0
        %v1783 = vadd.f32 0.0, %v1782
        %v1784 = vpop.f32.mrf.mxu0
        %1785 = vmatprep.mubr.f32.mxu0 0.0
        %1786 = vmatmul.mubr.f32.gmra.mxu0 %v1688
        %v1787 = vpop.f32.mrf.mxu0
        %v1788 = vadd.f32 0.0, %v1787
        %v1789 = vpop.f32.mrf.mxu0
        %1790 = vmatprep.mubr.f32.mxu0 0.0
        %1791 = vmatmul.mubr.f32.gmra.mxu0 %v1691
        %v1792 = vpop.f32.mrf.mxu0
        %v1793 = vadd.f32 0.0, %v1792
        %v1794 = vpop.f32.mrf.mxu0
        %1795 = vmatprep.mubr.f32.mxu0 0.0
        %1796 = vmatmul.mubr.f32.gmra.mxu0 %v1694
        %v1797 = vpop.f32.mrf.mxu0
        %v1798 = vadd.f32 0.0, %v1797
        %v1799 = vpop.f32.mrf.mxu0
        %1800 = vdwg.mxu0
        %s1801 = scalar_lea.vmem %s8, 128
        %v1802 = vld [vmem:[%s1801] sm:$0xff]
        %v1803 = vld [vmem:[%s1801 + $0x8] sm:$0xff]
        %v1804 = vld [vmem:[%s1801 + $0x10] sm:$0xff]
        %v1805 = vld [vmem:[%s1801 + $0x18] sm:$0xff]
        %v1806 = vld [vmem:[%s1801 + $0x20] sm:$0xff]
        %v1807 = vld [vmem:[%s1801 + $0x28] sm:$0xff]
        %v1808 = vld [vmem:[%s1801 + $0x30] sm:$0xff]
        %v1809 = vld [vmem:[%s1801 + $0x38] sm:$0xff]
        %v1810 = vmul.f32 %v1763, 2.0
        %v1811 = vmul.f32 %v1768, 2.0
        %v1812 = vmul.f32 %v1773, 2.0
        %v1813 = vmul.f32 %v1778, 2.0
        %v1814 = vmul.f32 %v1783, 2.0
        %v1815 = vmul.f32 %v1788, 2.0
        %v1816 = vmul.f32 %v1793, 2.0
        %v1817 = vmul.f32 %v1798, 2.0
        %1819 = vset.pattern.permute.xlu0 0
        %1820 = vperm.xlu0 %1819, %v1802
        %v1821 = vpop.permute.xlu0 %1820
        %1824 = vset.pattern.permute.xlu0 0
        %1825 = vperm.xlu0 %1824, %v1803
        %v1826 = vpop.permute.xlu0 %1825
        %1829 = vset.pattern.permute.xlu0 0
        %1830 = vperm.xlu0 %1829, %v1804
        %v1831 = vpop.permute.xlu0 %1830
        %1834 = vset.pattern.permute.xlu0 0
        %1835 = vperm.xlu0 %1834, %v1805
        %v1836 = vpop.permute.xlu0 %1835
        %1839 = vset.pattern.permute.xlu0 0
        %1840 = vperm.xlu0 %1839, %v1806
        %v1841 = vpop.permute.xlu0 %1840
        %1844 = vset.pattern.permute.xlu0 0
        %1845 = vperm.xlu0 %1844, %v1807
        %v1846 = vpop.permute.xlu0 %1845
        %1849 = vset.pattern.permute.xlu0 0
        %1850 = vperm.xlu0 %1849, %v1808
        %v1851 = vpop.permute.xlu0 %1850
        %1854 = vset.pattern.permute.xlu0 0
        %1855 = vperm.xlu0 %1854, %v1809
        %v1856 = vpop.permute.xlu0 %1855
        %v1858 = vsub.f32 %v1821, %v1810
        %v1859 = vsub.f32 %v1826, %v1811
        %v1860 = vsub.f32 %v1831, %v1812
        %v1861 = vsub.f32 %v1836, %v1813
        %v1862 = vsub.f32 %v1841, %v1814
        %v1863 = vsub.f32 %v1846, %v1815
        %v1864 = vsub.f32 %v1851, %v1816
        %v1865 = vsub.f32 %v1856, %v1817
        %v1866 = vmin.f32 %v1858, %v1862
        %v1867 = vmin.f32 %v1859, %v1863
        %v1868 = vmin.f32 %v1860, %v1864
        %v1869 = vmin.f32 %v1861, %v1865
        %v1870 = vmin.f32 %v1866, %v1867
        %v1871 = vmin.f32 %v1868, %v1869
        %v1872 = vmin.f32 %v1870, %v1871
        %v1873 = vrot.slane %v1872, 4
        %v1874 = vmin.f32 %v1872, %v1873
        %v1875 = vrot.slane %v1874, 2
        %v1876 = vmin.f32 %v1874, %v1875
        %v1877 = vrot.slane %v1876, 1
        %v1878 = vmin.f32 %v1876, %v1877
        %vm1879 = vcmp.eq.f32.partialorder %v1858, %v1878
        %vm1880 = vcmp.eq.f32.partialorder %v1859, %v1878
        %vm1881 = vcmp.eq.f32.partialorder %v1860, %v1878
        %vm1882 = vcmp.eq.f32.partialorder %v1861, %v1878
        %vm1883 = vcmp.eq.f32.partialorder %v1862, %v1878
        %vm1884 = vcmp.eq.f32.partialorder %v1863, %v1878
        %vm1885 = vcmp.eq.f32.partialorder %v1864, %v1878
        %vm1886 = vcmp.eq.f32.partialorder %v1865, %v1878
        %v1887 = vsel %vm1879, %v1045, 2147483647
        %v1888 = vsel %vm1880, %v1046, 2147483647
        %v1889 = vsel %vm1881, %v1047, 2147483647
        %v1890 = vsel %vm1882, %v1048, 2147483647
        %v1891 = vsel %vm1883, %v1049, 2147483647
        %v1892 = vsel %vm1884, %v1050, 2147483647
        %v1893 = vsel %vm1885, %v1051, 2147483647
        %v1894 = vsel %vm1886, %v1052, 2147483647
        %vm1895 = vcmp.lt.s32.totalorder %v1887, %v1891
        %v1896 = vsel %vm1895, %v1887, %v1891
        %vm1897 = vcmp.lt.s32.totalorder %v1888, %v1892
        %v1898 = vsel %vm1897, %v1888, %v1892
        %vm1899 = vcmp.lt.s32.totalorder %v1889, %v1893
        %v1900 = vsel %vm1899, %v1889, %v1893
        %vm1901 = vcmp.lt.s32.totalorder %v1890, %v1894
        %v1902 = vsel %vm1901, %v1890, %v1894
        %vm1903 = vcmp.lt.s32.totalorder %v1896, %v1898
        %v1904 = vsel %vm1903, %v1896, %v1898
        %vm1905 = vcmp.lt.s32.totalorder %v1900, %v1902
        %v1906 = vsel %vm1905, %v1900, %v1902
        %vm1907 = vcmp.lt.s32.totalorder %v1904, %v1906
        %v1908 = vsel %vm1907, %v1904, %v1906
        %v1909 = vrot.slane %v1908, 4
        %vm1910 = vcmp.lt.s32.totalorder %v1908, %v1909
        %v1911 = vsel %vm1910, %v1908, %v1909
        %v1912 = vrot.slane %v1911, 2
        %vm1913 = vcmp.lt.s32.totalorder %v1911, %v1912
        %v1914 = vsel %vm1913, %v1911, %v1912
        %v1915 = vrot.slane %v1914, 1
        %vm1916 = vcmp.lt.s32.totalorder %v1914, %v1915
        %v1917 = vsel %vm1916, %v1914, %v1915
        %1918 = vst [vmem:[%s349 + $0x2] sm:$0x1] %v1917
        %vm1919 = vcmp.eq.s32.totalorder %v1045, %v1917
        %vm1920 = vcmp.eq.s32.totalorder %v1046, %v1917
        %vm1921 = vcmp.eq.s32.totalorder %v1047, %v1917
        %vm1922 = vcmp.eq.s32.totalorder %v1048, %v1917
        %vm1923 = vcmp.eq.s32.totalorder %v1049, %v1917
        %vm1924 = vcmp.eq.s32.totalorder %v1050, %v1917
        %vm1925 = vcmp.eq.s32.totalorder %v1051, %v1917
        %vm1926 = vcmp.eq.s32.totalorder %v1052, %v1917
        %v1927 = vsel %vm1919, 1, 0
        %v1928 = vsel %vm1920, 1, 0
        %v1929 = vsel %vm1921, 1, 0
        %v1930 = vsel %vm1922, 1, 0
        %v1931 = vsel %vm1923, 1, 0
        %v1932 = vsel %vm1924, 1, 0
        %v1933 = vsel %vm1925, 1, 0
        %v1934 = vsel %vm1926, 1, 0
        %v1935 = vcvt.s32.f32 %v1927
        %v1936 = vcvt.s32.f32 %v1928
        %v1937 = vcvt.s32.f32 %v1929
        %v1938 = vcvt.s32.f32 %v1930
        %v1939 = vcvt.s32.f32 %v1931
        %v1940 = vcvt.s32.f32 %v1932
        %v1941 = vcvt.s32.f32 %v1933
        %v1942 = vcvt.s32.f32 %v1934
        %1943 = vxpose.xlu0.b32.start [1/16] %v1664, 128
        %1944 = vxpose.xlu0.b32.cont [2/16] %v1665, 128
        %1945 = vxpose.xlu0.b32.cont [3/16] %v1666, 128
        %1946 = vxpose.xlu0.b32.cont [4/16] %v1667, 128
        %1947 = vxpose.xlu0.b32.cont [5/16] %v1668, 128
        %1948 = vxpose.xlu0.b32.cont [6/16] %v1669, 128
        %1949 = vxpose.xlu0.b32.cont [7/16] %v1670, 128
        %1950 = vxpose.xlu0.b32.cont [8/16] %v1671, 128
        %1951 = vxpose.xlu0.b32.cont [9/16] 0.0, 128
        %1952 = vxpose.xlu0.b32.cont [10/16] 0.0, 128
        %1953 = vxpose.xlu0.b32.cont [11/16] 0.0, 128
        %1954 = vxpose.xlu0.b32.cont [12/16] 0.0, 128
        %1955 = vxpose.xlu0.b32.cont [13/16] 0.0, 128
        %1956 = vxpose.xlu0.b32.cont [14/16] 0.0, 128
        %1957 = vxpose.xlu0.b32.cont [15/16] 0.0, 128
        %1958 = vxpose.xlu0.b32.end [16/16] 0.0, 128
        %v1959 = vpop.trf.xlu0
        %v1960 = vpop.trf.xlu0
        %v1961 = vpop.trf.xlu0
        %v1962 = vpop.trf.xlu0
        %v1963 = vpop.trf.xlu0
        %v1964 = vpop.trf.xlu0
        %v1965 = vpop.trf.xlu0
        %v1966 = vpop.trf.xlu0
        %v1967 = vpop.trf.xlu0
        %v1968 = vpop.trf.xlu0
        %v1969 = vpop.trf.xlu0
        %v1970 = vpop.trf.xlu0
        %v1971 = vpop.trf.xlu0
        %v1972 = vpop.trf.xlu0
        %v1973 = vpop.trf.xlu0
        %v1974 = vpop.trf.xlu0
        %v1976 = vsel %vm594, %v1959, 0
        %v1979 = vsel %vm594, %v1960, 0
        %v1982 = vsel %vm594, %v1961, 0
        %v1985 = vsel %vm594, %v1962, 0
        %1987 = vmatprep.subr.mxu0 0.0
        %1988 = vmatpush1.msra.mxu0 0.0
        %1989 = vmatprep.subr.mxu0 0.0
        %1990 = vmatpush1.msra.mxu0 0.0
        %1991 = vmatprep.subr.mxu0 0.0
        %1992 = vmatpush1.msra.mxu0 0.0
        %1993 = vmatprep.subr.mxu0 0.0
        %1994 = vmatpush1.msra.mxu0 0.0
        %1995 = vmatprep.subr.mxu0 0.0
        %1996 = vmatpush1.msra.mxu0 0.0
        %1997 = vmatprep.subr.mxu0 0.0
        %1998 = vmatpush1.msra.mxu0 0.0
        %1999 = vmatprep.subr.mxu0 0.0
        %2000 = vmatpush1.msra.mxu0 0.0
        %2001 = vmatprep.subr.mxu0 0.0
        %2002 = vmatpush1.msra.mxu0 0.0
        %2003 = vmatprep.subr.mxu0 0.0
        %2004 = vmatpush1.msra.mxu0 %v1942
        %2005 = vmatprep.subr.mxu0 0.0
        %2006 = vmatpush1.msra.mxu0 %v1941
        %2007 = vmatprep.subr.mxu0 0.0
        %2008 = vmatpush1.msra.mxu0 %v1940
        %2009 = vmatprep.subr.mxu0 0.0
        %2010 = vmatpush1.msra.mxu0 %v1939
        %2011 = vmatprep.subr.mxu0 0.0
        %2012 = vmatpush1.msra.mxu0 %v1938
        %2013 = vmatprep.subr.mxu0 0.0
        %2014 = vmatpush1.msra.mxu0 %v1937
        %2015 = vmatprep.subr.mxu0 0.0
        %2016 = vmatpush1.msra.mxu0 %v1936
        %2017 = vmatprep.subr.mxu0 0.0
        %2018 = vmatpush1.msra.mxu0 %v1935
        %2019 = vmatprep.subr.mxu0 0.0
        %2020 = vmatpush2.msra.mxu0 0.0
        %2021 = vmatprep.subr.mxu0 0.0
        %2022 = vmatpush2.msra.mxu0 0.0
        %2023 = vmatprep.subr.mxu0 0.0
        %2024 = vmatpush2.msra.mxu0 0.0
        %2025 = vmatprep.subr.mxu0 0.0
        %2026 = vmatpush2.msra.mxu0 0.0
        %2027 = vmatprep.subr.mxu0 0.0
        %2028 = vmatpush2.msra.mxu0 0.0
        %2029 = vmatprep.subr.mxu0 0.0
        %2030 = vmatpush2.msra.mxu0 0.0
        %2031 = vmatprep.subr.mxu0 0.0
        %2032 = vmatpush2.msra.mxu0 0.0
        %2033 = vmatprep.subr.mxu0 0.0
        %2034 = vmatpush2.msra.mxu0 0.0
        %2035 = vmatprep.subr.mxu0 0.0
        %2036 = vmatpush2.msra.mxu0 0.0
        %2037 = vmatprep.subr.mxu0 0.0
        %2038 = vmatpush2.msra.mxu0 0.0
        %2039 = vmatprep.subr.mxu0 0.0
        %2040 = vmatpush2.msra.mxu0 0.0
        %2041 = vmatprep.subr.mxu0 0.0
        %2042 = vmatpush2.msra.mxu0 0.0
        %2043 = vmatprep.subr.mxu0 0.0
        %2044 = vmatpush2.msra.mxu0 0.0
        %2045 = vmatprep.subr.mxu0 0.0
        %2046 = vmatpush2.msra.mxu0 0.0
        %2047 = vmatprep.subr.mxu0 0.0
        %2048 = vmatpush2.msra.mxu0 0.0
        %2049 = vmatprep.subr.mxu0 0.0
        %2050 = vmatpush2.msra.mxu0 0.0
        %2051 = vmatprep.mubr.f32.mxu0 0.0
        %2052 = vmatmul.mubr.f32.gmra.mxu0 %v1976
        %v2053 = vpop.f32.mrf.mxu0
        %v2054 = vadd.f32 0.0, %v2053
        %v2055 = vpop.f32.mrf.mxu0
        %2056 = vmatprep.mubr.f32.mxu0 0.0
        %2057 = vmatmul.mubr.f32.gmra.mxu0 %v1979
        %v2058 = vpop.f32.mrf.mxu0
        %v2059 = vadd.f32 0.0, %v2058
        %v2060 = vpop.f32.mrf.mxu0
        %2061 = vmatprep.mubr.f32.mxu0 0.0
        %2062 = vmatmul.mubr.f32.gmra.mxu0 %v1982
        %v2063 = vpop.f32.mrf.mxu0
        %v2064 = vadd.f32 0.0, %v2063
        %v2065 = vpop.f32.mrf.mxu0
        %2066 = vmatprep.mubr.f32.mxu0 0.0
        %2067 = vmatmul.mubr.f32.gmra.mxu0 %v1985
        %v2068 = vpop.f32.mrf.mxu0
        %v2069 = vadd.f32 0.0, %v2068
        %v2070 = vpop.f32.mrf.mxu0
        %2071 = vdwg.mxu0
        %v2072 = vsub.f32 %v1659, %v2054
        %v2073 = vsub.f32 %v1660, %v2059
        %v2074 = vsub.f32 %v1661, %v2064
        %v2075 = vsub.f32 %v1662, %v2069
        %s2076 = scalar_lea.vmem %s7, 192
        %v2077 = vld [vmem:[%s2076] sm:$0xff]
        %v2078 = vld [vmem:[%s2076 + $0x8] sm:$0xff]
        %v2079 = vld [vmem:[%s2076 + $0x10] sm:$0xff]
        %v2080 = vld [vmem:[%s2076 + $0x18] sm:$0xff]
        %v2081 = vld [vmem:[%s2076 + $0x20] sm:$0xff]
        %v2082 = vld [vmem:[%s2076 + $0x28] sm:$0xff]
        %v2083 = vld [vmem:[%s2076 + $0x30] sm:$0xff]
        %v2084 = vld [vmem:[%s2076 + $0x38] sm:$0xff]
        %v2086 = vsel %vm837, %v2077, 0
        %v2089 = vsel %vm837, %v2078, 0
        %v2092 = vsel %vm837, %v2079, 0
        %v2095 = vsel %vm837, %v2080, 0
        %v2098 = vsel %vm837, %v2081, 0
        %v2101 = vsel %vm837, %v2082, 0
        %v2104 = vsel %vm837, %v2083, 0
        %v2107 = vsel %vm837, %v2084, 0
        %2109 = vmatprep.subr.mxu0 0.0
        %2110 = vmatpush1.msra.mxu0 0.0
        %2111 = vmatprep.subr.mxu0 0.0
        %2112 = vmatpush1.msra.mxu0 0.0
        %2113 = vmatprep.subr.mxu0 0.0
        %2114 = vmatpush1.msra.mxu0 0.0
        %2115 = vmatprep.subr.mxu0 0.0
        %2116 = vmatpush1.msra.mxu0 0.0
        %2117 = vmatprep.subr.mxu0 0.0
        %2118 = vmatpush1.msra.mxu0 0.0
        %2119 = vmatprep.subr.mxu0 0.0
        %2120 = vmatpush1.msra.mxu0 0.0
        %2121 = vmatprep.subr.mxu0 0.0
        %2122 = vmatpush1.msra.mxu0 0.0
        %2123 = vmatprep.subr.mxu0 0.0
        %2124 = vmatpush1.msra.mxu0 0.0
        %2125 = vmatprep.subr.mxu0 0.0
        %2126 = vmatpush1.msra.mxu0 0.0
        %2127 = vmatprep.subr.mxu0 0.0
        %2128 = vmatpush1.msra.mxu0 0.0
        %2129 = vmatprep.subr.mxu0 0.0
        %2130 = vmatpush1.msra.mxu0 0.0
        %2131 = vmatprep.subr.mxu0 0.0
        %2132 = vmatpush1.msra.mxu0 0.0
        %2133 = vmatprep.subr.mxu0 0.0
        %2134 = vmatpush1.msra.mxu0 %v2075
        %2135 = vmatprep.subr.mxu0 0.0
        %2136 = vmatpush1.msra.mxu0 %v2074
        %2137 = vmatprep.subr.mxu0 0.0
        %2138 = vmatpush1.msra.mxu0 %v2073
        %2139 = vmatprep.subr.mxu0 0.0
        %2140 = vmatpush1.msra.mxu0 %v2072
        %2141 = vmatprep.subr.mxu0 0.0
        %2142 = vmatpush2.msra.mxu0 0.0
        %2143 = vmatprep.subr.mxu0 0.0
        %2144 = vmatpush2.msra.mxu0 0.0
        %2145 = vmatprep.subr.mxu0 0.0
        %2146 = vmatpush2.msra.mxu0 0.0
        %2147 = vmatprep.subr.mxu0 0.0
        %2148 = vmatpush2.msra.mxu0 0.0
        %2149 = vmatprep.subr.mxu0 0.0
        %2150 = vmatpush2.msra.mxu0 0.0
        %2151 = vmatprep.subr.mxu0 0.0
        %2152 = vmatpush2.msra.mxu0 0.0
        %2153 = vmatprep.subr.mxu0 0.0
        %2154 = vmatpush2.msra.mxu0 0.0
        %2155 = vmatprep.subr.mxu0 0.0
        %2156 = vmatpush2.msra.mxu0 0.0
        %2157 = vmatprep.subr.mxu0 0.0
        %2158 = vmatpush2.msra.mxu0 0.0
        %2159 = vmatprep.subr.mxu0 0.0
        %2160 = vmatpush2.msra.mxu0 0.0
        %2161 = vmatprep.subr.mxu0 0.0
        %2162 = vmatpush2.msra.mxu0 0.0
        %2163 = vmatprep.subr.mxu0 0.0
        %2164 = vmatpush2.msra.mxu0 0.0
        %2165 = vmatprep.subr.mxu0 0.0
        %2166 = vmatpush2.msra.mxu0 0.0
        %2167 = vmatprep.subr.mxu0 0.0
        %2168 = vmatpush2.msra.mxu0 0.0
        %2169 = vmatprep.subr.mxu0 0.0
        %2170 = vmatpush2.msra.mxu0 0.0
        %2171 = vmatprep.subr.mxu0 0.0
        %2172 = vmatpush2.msra.mxu0 0.0
        %2173 = vmatprep.mubr.f32.mxu0 0.0
        %2174 = vmatmul.mubr.f32.gmra.mxu0 %v2086
        %v2175 = vpop.f32.mrf.mxu0
        %v2176 = vadd.f32 0.0, %v2175
        %v2177 = vpop.f32.mrf.mxu0
        %2178 = vmatprep.mubr.f32.mxu0 0.0
        %2179 = vmatmul.mubr.f32.gmra.mxu0 %v2089
        %v2180 = vpop.f32.mrf.mxu0
        %v2181 = vadd.f32 0.0, %v2180
        %v2182 = vpop.f32.mrf.mxu0
        %2183 = vmatprep.mubr.f32.mxu0 0.0
        %2184 = vmatmul.mubr.f32.gmra.mxu0 %v2092
        %v2185 = vpop.f32.mrf.mxu0
        %v2186 = vadd.f32 0.0, %v2185
        %v2187 = vpop.f32.mrf.mxu0
        %2188 = vmatprep.mubr.f32.mxu0 0.0
        %2189 = vmatmul.mubr.f32.gmra.mxu0 %v2095
        %v2190 = vpop.f32.mrf.mxu0
        %v2191 = vadd.f32 0.0, %v2190
        %v2192 = vpop.f32.mrf.mxu0
        %2193 = vmatprep.mubr.f32.mxu0 0.0
        %2194 = vmatmul.mubr.f32.gmra.mxu0 %v2098
        %v2195 = vpop.f32.mrf.mxu0
        %v2196 = vadd.f32 0.0, %v2195
        %v2197 = vpop.f32.mrf.mxu0
        %2198 = vmatprep.mubr.f32.mxu0 0.0
        %2199 = vmatmul.mubr.f32.gmra.mxu0 %v2101
        %v2200 = vpop.f32.mrf.mxu0
        %v2201 = vadd.f32 0.0, %v2200
        %v2202 = vpop.f32.mrf.mxu0
        %2203 = vmatprep.mubr.f32.mxu0 0.0
        %2204 = vmatmul.mubr.f32.gmra.mxu0 %v2104
        %v2205 = vpop.f32.mrf.mxu0
        %v2206 = vadd.f32 0.0, %v2205
        %v2207 = vpop.f32.mrf.mxu0
        %2208 = vmatprep.mubr.f32.mxu0 0.0
        %2209 = vmatmul.mubr.f32.gmra.mxu0 %v2107
        %v2210 = vpop.f32.mrf.mxu0
        %v2211 = vadd.f32 0.0, %v2210
        %v2212 = vpop.f32.mrf.mxu0
        %2213 = vdwg.mxu0
        %s2214 = scalar_lea.vmem %s8, 192
        %v2215 = vld [vmem:[%s2214] sm:$0xff]
        %v2216 = vld [vmem:[%s2214 + $0x8] sm:$0xff]
        %v2217 = vld [vmem:[%s2214 + $0x10] sm:$0xff]
        %v2218 = vld [vmem:[%s2214 + $0x18] sm:$0xff]
        %v2219 = vld [vmem:[%s2214 + $0x20] sm:$0xff]
        %v2220 = vld [vmem:[%s2214 + $0x28] sm:$0xff]
        %v2221 = vld [vmem:[%s2214 + $0x30] sm:$0xff]
        %v2222 = vld [vmem:[%s2214 + $0x38] sm:$0xff]
        %v2223 = vmul.f32 %v2176, 2.0
        %v2224 = vmul.f32 %v2181, 2.0
        %v2225 = vmul.f32 %v2186, 2.0
        %v2226 = vmul.f32 %v2191, 2.0
        %v2227 = vmul.f32 %v2196, 2.0
        %v2228 = vmul.f32 %v2201, 2.0
        %v2229 = vmul.f32 %v2206, 2.0
        %v2230 = vmul.f32 %v2211, 2.0
        %2232 = vset.pattern.permute.xlu0 0
        %2233 = vperm.xlu0 %2232, %v2215
        %v2234 = vpop.permute.xlu0 %2233
        %2237 = vset.pattern.permute.xlu0 0
        %2238 = vperm.xlu0 %2237, %v2216
        %v2239 = vpop.permute.xlu0 %2238
        %2242 = vset.pattern.permute.xlu0 0
        %2243 = vperm.xlu0 %2242, %v2217
        %v2244 = vpop.permute.xlu0 %2243
        %2247 = vset.pattern.permute.xlu0 0
        %2248 = vperm.xlu0 %2247, %v2218
        %v2249 = vpop.permute.xlu0 %2248
        %2252 = vset.pattern.permute.xlu0 0
        %2253 = vperm.xlu0 %2252, %v2219
        %v2254 = vpop.permute.xlu0 %2253
        %2257 = vset.pattern.permute.xlu0 0
        %2258 = vperm.xlu0 %2257, %v2220
        %v2259 = vpop.permute.xlu0 %2258
        %2262 = vset.pattern.permute.xlu0 0
        %2263 = vperm.xlu0 %2262, %v2221
        %v2264 = vpop.permute.xlu0 %2263
        %2267 = vset.pattern.permute.xlu0 0
        %2268 = vperm.xlu0 %2267, %v2222
        %v2269 = vpop.permute.xlu0 %2268
        %v2271 = vsub.f32 %v2234, %v2223
        %v2272 = vsub.f32 %v2239, %v2224
        %v2273 = vsub.f32 %v2244, %v2225
        %v2274 = vsub.f32 %v2249, %v2226
        %v2275 = vsub.f32 %v2254, %v2227
        %v2276 = vsub.f32 %v2259, %v2228
        %v2277 = vsub.f32 %v2264, %v2229
        %v2278 = vsub.f32 %v2269, %v2230
        %v2279 = vmin.f32 %v2271, %v2275
        %v2280 = vmin.f32 %v2272, %v2276
        %v2281 = vmin.f32 %v2273, %v2277
        %v2282 = vmin.f32 %v2274, %v2278
        %v2283 = vmin.f32 %v2279, %v2280
        %v2284 = vmin.f32 %v2281, %v2282
        %v2285 = vmin.f32 %v2283, %v2284
        %v2286 = vrot.slane %v2285, 4
        %v2287 = vmin.f32 %v2285, %v2286
        %v2288 = vrot.slane %v2287, 2
        %v2289 = vmin.f32 %v2287, %v2288
        %v2290 = vrot.slane %v2289, 1
        %v2291 = vmin.f32 %v2289, %v2290
        %vm2292 = vcmp.eq.f32.partialorder %v2271, %v2291
        %vm2293 = vcmp.eq.f32.partialorder %v2272, %v2291
        %vm2294 = vcmp.eq.f32.partialorder %v2273, %v2291
        %vm2295 = vcmp.eq.f32.partialorder %v2274, %v2291
        %vm2296 = vcmp.eq.f32.partialorder %v2275, %v2291
        %vm2297 = vcmp.eq.f32.partialorder %v2276, %v2291
        %vm2298 = vcmp.eq.f32.partialorder %v2277, %v2291
        %vm2299 = vcmp.eq.f32.partialorder %v2278, %v2291
        %v2300 = vsel %vm2292, %v1045, 2147483647
        %v2301 = vsel %vm2293, %v1046, 2147483647
        %v2302 = vsel %vm2294, %v1047, 2147483647
        %v2303 = vsel %vm2295, %v1048, 2147483647
        %v2304 = vsel %vm2296, %v1049, 2147483647
        %v2305 = vsel %vm2297, %v1050, 2147483647
        %v2306 = vsel %vm2298, %v1051, 2147483647
        %v2307 = vsel %vm2299, %v1052, 2147483647
        %vm2308 = vcmp.lt.s32.totalorder %v2300, %v2304
        %v2309 = vsel %vm2308, %v2300, %v2304
        %vm2310 = vcmp.lt.s32.totalorder %v2301, %v2305
        %v2311 = vsel %vm2310, %v2301, %v2305
        %vm2312 = vcmp.lt.s32.totalorder %v2302, %v2306
        %v2313 = vsel %vm2312, %v2302, %v2306
        %vm2314 = vcmp.lt.s32.totalorder %v2303, %v2307
        %v2315 = vsel %vm2314, %v2303, %v2307
        %vm2316 = vcmp.lt.s32.totalorder %v2309, %v2311
        %v2317 = vsel %vm2316, %v2309, %v2311
        %vm2318 = vcmp.lt.s32.totalorder %v2313, %v2315
        %v2319 = vsel %vm2318, %v2313, %v2315
        %vm2320 = vcmp.lt.s32.totalorder %v2317, %v2319
        %v2321 = vsel %vm2320, %v2317, %v2319
        %v2322 = vrot.slane %v2321, 4
        %vm2323 = vcmp.lt.s32.totalorder %v2321, %v2322
        %v2324 = vsel %vm2323, %v2321, %v2322
        %v2325 = vrot.slane %v2324, 2
        %vm2326 = vcmp.lt.s32.totalorder %v2324, %v2325
        %v2327 = vsel %vm2326, %v2324, %v2325
        %v2328 = vrot.slane %v2327, 1
        %vm2329 = vcmp.lt.s32.totalorder %v2327, %v2328
        %v2330 = vsel %vm2329, %v2327, %v2328
        %2331 = vst [vmem:[%s349 + $0x3] sm:$0x1] %v2330
        %s2332 = sand.u32 %s241, 1
        %s2333 = scalar_lea.sflag [#allocation3], %s2332
        %s2334 = sand.u32 %s241, 1
        %s2335 = smul.addr %s2334, 4
        %s2336 = scalar_lea.vmem [#allocation2], %s2335
        // Predicated region
        $region57: #{audio_tokenizer_encode.1} parent=55 // pred_check
          %p2337 = pneg %p251
        $region58: #{audio_tokenizer_encode.1} parent=55 // pred_check_branch
          %2339 = sbr.rel (%p2337) target = $region60
        $region59: #{audio_tokenizer_encode.1} parent=55 // pred_region
          %s2341 = ssub.s32 64, 64
          %2342 = vsyncadd %s2333, %s2341
          %s2343 = smul.addr %s27, 2
          %s2344 = sadd.s32 %s28, %s2343
          %s2345 = smul.addr %s2344, 64
          %s2346 = scalar_lea.hbm %s9, %s2345
          %s2348 = sshll.u32 %s2336, 4
          %s2349 = int_to_ptr.vmem [resolvable:$true] %s2348
          %2351 = dma.vmem_to_hbm [thread:$0]  %s2349, 64, %s2346, %s2333
        $region60: #{audio_tokenizer_encode.1} parent=55 // pred_fallthru
          _
      $region56: #{audio_tokenizer_encode.1} parent=5 // pred_fallthru
        _
      %p2352 = scmp.le.s32.totalorder 2, %s18
      // Predicated region
      $region61: #{audio_tokenizer_encode.1} parent=5 // pred_check
        %p2353 = pneg %p2352
      $region62: #{audio_tokenizer_encode.1} parent=5 // pred_check_branch
        %2355 = sbr.rel (%p2353) target = $region64
      $region63: #{audio_tokenizer_encode.1} parent=5 // pred_region
        %s2356 = ssub.s32 %s18, 2
        // Predicated region
        $region65: #{audio_tokenizer_encode.1} parent=63 // pred_check
          %p2357 = pneg %p257
        $region66: #{audio_tokenizer_encode.1} parent=63 // pred_check_branch
          %2359 = sbr.rel (%p2357) target = $region68
        $region67: #{audio_tokenizer_encode.1} parent=63 // pred_region
          %s2360 = sand.u32 %s242, 1
          %s2361 = scalar_lea.sflag [#allocation3], %s2360
          %s2362 = sand.u32 %s242, 1
          %s2363 = smul.addr %s2362, 4
          %s2364 = scalar_lea.vmem [#allocation2], %s2363
          %2365 = dma.done %s2361, 64
        $region68: #{audio_tokenizer_encode.1} parent=63 // pred_fallthru
          _
      $region64: #{audio_tokenizer_encode.1} parent=5 // pred_fallthru
        _
    $region6: #{audio_tokenizer_encode.1} parent=1 // loop_footer
      %s22 = sadd.s32 1, %s18
    $region7: #{audio_tokenizer_encode.1} parent=1 // loop_footer_branch
      %17 = sbr.rel target = $region3
    $region8: #{audio_tokenizer_encode.1} parent=1 // loop_exit
      _
    %2366 = vsyncpa [#allocation3], 1
    %s2367 = scalar_lea.sflag [#allocation3], 1
    %2368 = vsyncpa %s2367, 1

</llo_original>
